<compile_context>
chip_gen: v6e
topology: v6e:2x2x1
jax: 0.10.0
libtpu: 0.0.40
codegen_flags: <defaults>
</compile_context>

<pallas_src>
import functools

import jax
import jax.numpy as jnp
from jax.experimental import pallas as pl
from jax.experimental.pallas import tpu as pltpu

LN_EPS = 1e-5  # PyTorch nn.LayerNorm default


def _layernorm(x, gamma, beta):
    mu = jnp.mean(x, axis=-1, keepdims=True)
    var = jnp.mean(jnp.square(x - mu), axis=-1, keepdims=True)
    return (x - mu) * jax.lax.rsqrt(var + LN_EPS) * gamma + beta


def _gelu_exact(x):
    # PyTorch nn.GELU() default is the exact erf formulation.
    return 0.5 * x * (1.0 + jax.lax.erf(x * 0.7071067811865476))


def attention_block_kernel(
    x_ref,                      # (Bb*S, E)  f32 activations (whole batch-block)
    ln1_g, ln1_b,               # (1, E)
    wqkv, bqkv,                 # (E, 3E) [matmul dtype], (1, 3E) f32
    wo, bo,                     # (E, E)  [matmul dtype], (1, E)  f32
    ln2_g, ln2_b,               # (1, E)
    w1, b1,                     # (E, H)  [matmul dtype], (1, H)  f32
    w2, b2,                     # (H, E)  [matmul dtype], (1, E)  f32
    o_ref,                      # (Bb*S, E)
    *, num_heads, batch_block, seq_len, matmul_dtype,
):
    Bb, S = batch_block, seq_len
    md = matmul_dtype

    x = x_ref[...]                               # (N, E) f32, N = Bb*S
    N, E = x.shape
    D = E // num_heads
    scale = 1.0 / (D ** 0.5)

    # ---- LayerNorm 1 (f32, VPU) --------------------------------------------
    xn = _layernorm(x, ln1_g[0], ln1_b[0])

    # ---- Fused QKV projection: one (N,E)@(E,3E) matmul ---------------------
    qkv = jnp.dot(xn.astype(md), wqkv[...],
                  preferred_element_type=jnp.float32) + bqkv[0]
    q = qkv[:, 0 * E:1 * E].reshape(Bb, S, E)
    k = qkv[:, 1 * E:2 * E].reshape(Bb, S, E)
    v = qkv[:, 2 * E:3 * E].reshape(Bb, S, E)

    # ---- Per-head attention (softmax in f32; dots on MXU) ------------------
    heads = []
    for h in range(num_heads):
        lo = h * D
        qh = q[:, :, lo:lo + D]                  # (Bb, S, D) lane slice
        kh = k[:, :, lo:lo + D]
        vh = v[:, :, lo:lo + D]
        # Contraction on the last dim -> no kh.T / XLU transpose.
        s = jnp.einsum("bqd,bkd->bqk", qh.astype(md), kh.astype(md),
                       preferred_element_type=jnp.float32) * scale
        s = s - jnp.max(s, axis=-1, keepdims=True)
        p = jnp.exp(s)
        # Approx reciprocal runs on the otherwise-idle EUP slot.
        p = p * pl.reciprocal(jnp.sum(p, axis=-1, keepdims=True), approx=True)
        heads.append(jnp.einsum("bqk,bkd->bqd", p.astype(md), vh.astype(md),
                                preferred_element_type=jnp.float32))

    # ---- Single output projection over the concatenated heads --------------
    attn = jnp.concatenate(heads, axis=-1).reshape(N, E)      # (N, E)
    proj = jnp.dot(attn.astype(md), wo[...],
                   preferred_element_type=jnp.float32) + bo[0]
    x1 = x + proj                                # residual 1

    # ---- LayerNorm 2 + MLP (GELU exact, f32 elementwise) -------------------
    yn = _layernorm(x1, ln2_g[0], ln2_b[0])
    h1 = jnp.dot(yn.astype(md), w1[...],
                 preferred_element_type=jnp.float32) + b1[0]
    h1 = _gelu_exact(h1)
    h2 = jnp.dot(h1.astype(md), w2[...],
                 preferred_element_type=jnp.float32) + b2[0]
    # Dropout(p=0.0) is the identity -> nothing to do.

    o_ref[...] = (x1 + h2).astype(o_ref.dtype)   # residual 2


def attention_block(x_bse, prm, num_heads, *, batch_block=None,
                    matmul_dtype=jnp.float32):
    """x_bse: (B, S, E) float32, batch-first (no layout transposes needed)."""
    B, S, E = x_bse.shape
    assert E % num_heads == 0, "embed_dim must be divisible by num_heads"
    if batch_block is None:
        batch_block = B                          # whole batch in one block
    Bb = batch_block
    assert B % Bb == 0
    rows_per_block = Bb * S
    assert Bb == B or rows_per_block % 8 == 0    # (8,128) block rule on rows
    N = B * S
    md = jnp.dtype(matmul_dtype)

    # MXU weight operands in matmul dtype (bf16 on v6e/v7x); LN params and
    # biases stay f32 (added to f32 accumulators on the VPU).
    wqkv = jnp.concatenate([prm["wq"], prm["wk"], prm["wv"]], axis=1).astype(md)
    bqkv = jnp.concatenate([prm["bq"], prm["bk"], prm["bv"]], axis=1)
    weights = [
        prm["ln1_g"], prm["ln1_b"],
        wqkv, bqkv,
        prm["wo"].astype(md), prm["bo"],
        prm["ln2_g"], prm["ln2_b"],
        prm["w1"].astype(md), prm["b1"],
        prm["w2"].astype(md), prm["b2"],
    ]

    x_flat = x_bse.reshape(N, E)                 # lane-contiguous 2-D slab

    out = pl.pallas_call(
        functools.partial(attention_block_kernel, num_heads=num_heads,
                          batch_block=Bb, seq_len=S, matmul_dtype=md),
        out_shape=jax.ShapeDtypeStruct((N, E), x_bse.dtype),
        grid=(B // Bb,),
        in_specs=[pl.BlockSpec((rows_per_block, E), lambda i: (i, 0))]
        + [pl.BlockSpec(w.shape, lambda i: (0, 0)) for w in weights],
        out_specs=pl.BlockSpec((rows_per_block, E), lambda i: (i, 0)),
        compiler_params=pltpu.CompilerParams(
            dimension_semantics=("parallel",)),
    )(x_flat, *weights)

    return out.reshape(B, S, E)


# ------------------------- pure-JAX reference (f32) -------------------------
def reference(x_bse, prm, num_heads):
    def one(x):                                  # x: (S, E)
        S, E = x.shape
        D = E // num_heads
        xn = _layernorm(x, prm["ln1_g"][0], prm["ln1_b"][0])
        q = xn @ prm["wq"] + prm["bq"][0]
        k = xn @ prm["wk"] + prm["bk"][0]
        v = xn @ prm["wv"] + prm["bv"][0]
        qh = q.reshape(S, num_heads, D).transpose(1, 0, 2)
        kh = k.reshape(S, num_heads, D).transpose(1, 0, 2)
        vh = v.reshape(S, num_heads, D).transpose(1, 0, 2)
        s = jnp.einsum("hqd,hkd->hqk", qh, kh) / (D ** 0.5)
        p = jax.nn.softmax(s, axis=-1)
        heads = jnp.einsum("hqk,hkd->hqd", p, vh)
        attn = heads.transpose(1, 0, 2).reshape(S, E)
        proj = attn @ prm["wo"] + prm["bo"][0]
        x1 = x + proj
        yn = _layernorm(x1, prm["ln2_g"][0], prm["ln2_b"][0])
        h1 = _gelu_exact(yn @ prm["w1"] + prm["b1"][0])
        return x1 + (h1 @ prm["w2"] + prm["b2"][0])

    return jax.vmap(one)(x_bse)


if __name__ == "__main__":
    B, S, E, HID, HEADS = 2, 8, 32, 64, 4

    key = jax.random.PRNGKey(0)
    ks = jax.random.split(key, 13)

    # PyTorch-parameter-shaped tensors, deterministically initialized.
    in_proj_w = 0.05 * jax.random.normal(ks[0], (3 * E, E), jnp.float32)
    in_proj_b = 0.05 * jax.random.normal(ks[1], (3 * E,), jnp.float32)
    out_proj_w = 0.05 * jax.random.normal(ks[2], (E, E), jnp.float32)
    out_proj_b = 0.05 * jax.random.normal(ks[3], (E,), jnp.float32)
    lin1_w = 0.05 * jax.random.normal(ks[4], (HID, E), jnp.float32)
    lin1_b = 0.05 * jax.random.normal(ks[5], (HID,), jnp.float32)
    lin2_w = 0.05 * jax.random.normal(ks[6], (E, HID), jnp.float32)
    lin2_b = 0.05 * jax.random.normal(ks[7], (E,), jnp.float32)
    ln1_g = 1.0 + 0.1 * jax.random.normal(ks[8], (E,), jnp.float32)
    ln1_b = 0.1 * jax.random.normal(ks[9], (E,), jnp.float32)
    ln2_g = 1.0 + 0.1 * jax.random.normal(ks[10], (E,), jnp.float32)
    ln2_b = 0.1 * jax.random.normal(ks[11], (E,), jnp.float32)

    # Re-layout for the kernel: y = x @ W (pre-transposed) and 2-D biases.
    prm = {
        "ln1_g": ln1_g.reshape(1, E), "ln1_b": ln1_b.reshape(1, E),
        "wq": in_proj_w[0 * E:1 * E].T, "wk": in_proj_w[1 * E:2 * E].T,
        "wv": in_proj_w[2 * E:3 * E].T,
        "bq": in_proj_b[0 * E:1 * E].reshape(1, E),
        "bk": in_proj_b[1 * E:2 * E].reshape(1, E),
        "bv": in_proj_b[2 * E:3 * E].reshape(1, E),
        "wo": out_proj_w.T, "bo": out_proj_b.reshape(1, E),
        "ln2_g": ln2_g.reshape(1, E), "ln2_b": ln2_b.reshape(1, E),
        "w1": lin1_w.T, "b1": lin1_b.reshape(1, HID),
        "w2": lin2_w.T, "b2": lin2_b.reshape(1, E),
    }

    x = jax.random.normal(ks[12], (B, S, E), jnp.float32)   # batch-first
    ref = reference(x, prm, HEADS)

    # f32 MXU operands (tight check; approx softmax reciprocal -> 1e-3 tol).
    out_f32 = jax.block_until_ready(
        attention_block(x, prm, HEADS, matmul_dtype=jnp.float32))
    assert out_f32.shape == (B, S, E)
    assert jnp.allclose(out_f32, ref, atol=1e-3, rtol=1e-3), (
        float(jnp.max(jnp.abs(out_f32 - ref))))

    # bf16 MXU operands (v6e/v7x fast path; bf16-aware tolerance).
    out_bf16 = jax.block_until_ready(
        attention_block(x, prm, HEADS, matmul_dtype=jnp.bfloat16))
    assert jnp.allclose(out_bf16, ref, atol=5e-2, rtol=5e-2), (
        float(jnp.max(jnp.abs(out_bf16 - ref))))

    print("KERNEL_OK")
</pallas_src>

<mosaic_0001>
module attributes {stable_mosaic.version = 11 : i64} {
  func.func @attention_block_kernel(%arg0: i32, %arg1: memref<16x32xf32, #tpu.memory_space<vmem>>, %arg2: memref<1x32xf32, #tpu.memory_space<vmem>>, %arg3: memref<1x32xf32, #tpu.memory_space<vmem>>, %arg4: memref<32x96xf32, #tpu.memory_space<vmem>>, %arg5: memref<1x96xf32, #tpu.memory_space<vmem>>, %arg6: memref<32x32xf32, #tpu.memory_space<vmem>>, %arg7: memref<1x32xf32, #tpu.memory_space<vmem>>, %arg8: memref<1x32xf32, #tpu.memory_space<vmem>>, %arg9: memref<1x32xf32, #tpu.memory_space<vmem>>, %arg10: memref<32x64xf32, #tpu.memory_space<vmem>>, %arg11: memref<1x64xf32, #tpu.memory_space<vmem>>, %arg12: memref<64x32xf32, #tpu.memory_space<vmem>>, %arg13: memref<1x32xf32, #tpu.memory_space<vmem>>, %arg14: memref<16x32xf32, #tpu.memory_space<vmem>>) attributes {dimension_semantics = [#tpu.dimension_semantics<parallel>], iteration_bounds = array<i64: 1>, scalar_prefetch = 0 : i64, scratch_operands = 0 : i64, tpu.core_type = #tpu.core_type<tc>, window_params = [{transform_indices = @transform_0, window_bounds = array<i64: 16, 32>}, {pipeline_mode = #tpu.pipeline_mode<synchronous>, transform_indices = @transform_1, window_bounds = array<i64: 1, 32>}, {pipeline_mode = #tpu.pipeline_mode<synchronous>, transform_indices = @transform_2, window_bounds = array<i64: 1, 32>}, {pipeline_mode = #tpu.pipeline_mode<synchronous>, transform_indices = @transform_3, window_bounds = array<i64: 32, 96>}, {pipeline_mode = #tpu.pipeline_mode<synchronous>, transform_indices = @transform_4, window_bounds = array<i64: 1, 96>}, {pipeline_mode = #tpu.pipeline_mode<synchronous>, transform_indices = @transform_5, window_bounds = array<i64: 32, 32>}, {pipeline_mode = #tpu.pipeline_mode<synchronous>, transform_indices = @transform_6, window_bounds = array<i64: 1, 32>}, {pipeline_mode = #tpu.pipeline_mode<synchronous>, transform_indices = @transform_7, window_bounds = array<i64: 1, 32>}, {pipeline_mode = #tpu.pipeline_mode<synchronous>, transform_indices = @transform_8, window_bounds = array<i64: 1, 32>}, {pipeline_mode = #tpu.pipeline_mode<synchronous>, transform_indices = @transform_9, window_bounds = array<i64: 32, 64>}, {pipeline_mode = #tpu.pipeline_mode<synchronous>, transform_indices = @transform_10, window_bounds = array<i64: 1, 64>}, {pipeline_mode = #tpu.pipeline_mode<synchronous>, transform_indices = @transform_11, window_bounds = array<i64: 64, 32>}, {pipeline_mode = #tpu.pipeline_mode<synchronous>, transform_indices = @transform_12, window_bounds = array<i64: 1, 32>}, {transform_indices = @transform_13, window_bounds = array<i64: 16, 32>}]} {
    %c0 = arith.constant 0 : index
    %c0_0 = arith.constant 0 : index
    %0 = vector.load %arg1[%c0, %c0_0] : memref<16x32xf32, #tpu.memory_space<vmem>>, vector<16x32xf32>
    %c0_1 = arith.constant 0 : index
    %c0_2 = arith.constant 0 : index
    %1 = vector.load %arg2[%c0_1, %c0_2] : memref<1x32xf32, #tpu.memory_space<vmem>>, vector<1x32xf32>
    %2 = vector.shape_cast %1 : vector<1x32xf32> to vector<32xf32>
    %c0_3 = arith.constant 0 : index
    %c0_4 = arith.constant 0 : index
    %3 = vector.load %arg3[%c0_3, %c0_4] : memref<1x32xf32, #tpu.memory_space<vmem>>, vector<1x32xf32>
    %4 = vector.shape_cast %3 : vector<1x32xf32> to vector<32xf32>
    %cst = arith.constant dense<0.000000e+00> : vector<16xf32>
    %5 = vector.multi_reduction <add>, %0, %cst [1] : vector<16x32xf32> to vector<16xf32>
    %6 = vector.shape_cast %5 : vector<16xf32> to vector<16x1xf32>
    %cst_5 = arith.constant 3.200000e+01 : f32
    %7 = vector.broadcast %cst_5 : f32 to vector<16x1xf32>
    %8 = arith.divf %6, %7 : vector<16x1xf32>
    %9 = vector.broadcast %8 : vector<16x1xf32> to vector<16x32xf32>
    %10 = arith.subf %0, %9 : vector<16x32xf32>
    %11 = arith.mulf %10, %10 : vector<16x32xf32>
    %cst_6 = arith.constant dense<0.000000e+00> : vector<16xf32>
    %12 = vector.multi_reduction <add>, %11, %cst_6 [1] : vector<16x32xf32> to vector<16xf32>
    %13 = vector.shape_cast %12 : vector<16xf32> to vector<16x1xf32>
    %cst_7 = arith.constant 3.200000e+01 : f32
    %14 = vector.broadcast %cst_7 : f32 to vector<16x1xf32>
    %15 = arith.divf %13, %14 : vector<16x1xf32>
    %16 = vector.broadcast %8 : vector<16x1xf32> to vector<16x32xf32>
    %17 = arith.subf %0, %16 : vector<16x32xf32>
    %cst_8 = arith.constant 9.99999974E-6 : f32
    %18 = vector.broadcast %cst_8 : f32 to vector<16x1xf32>
    %19 = arith.addf %15, %18 : vector<16x1xf32>
    %20 = math.rsqrt %19 : vector<16x1xf32>
    %21 = vector.broadcast %20 : vector<16x1xf32> to vector<16x32xf32>
    %22 = arith.mulf %17, %21 : vector<16x32xf32>
    %23 = vector.shape_cast %2 : vector<32xf32> to vector<1x32xf32>
    %24 = vector.broadcast %23 : vector<1x32xf32> to vector<16x32xf32>
    %25 = arith.mulf %22, %24 : vector<16x32xf32>
    %26 = vector.shape_cast %4 : vector<32xf32> to vector<1x32xf32>
    %27 = vector.broadcast %26 : vector<1x32xf32> to vector<16x32xf32>
    %28 = arith.addf %25, %27 : vector<16x32xf32>
    %c0_9 = arith.constant 0 : index
    %c0_10 = arith.constant 0 : index
    %29 = vector.load %arg4[%c0_9, %c0_10] : memref<32x96xf32, #tpu.memory_space<vmem>>, vector<32x96xf32>
    %cst_11 = arith.constant dense<0.000000e+00> : vector<16x96xf32>
    %30 = tpu.matmul %28, %29, %cst_11 {dimension_numbers = #tpu.dot_dimension_numbers<[1], [0], [0], [1], [0, 0, 1, 1], [], []>} : vector<16x32xf32>, vector<32x96xf32>, vector<16x96xf32> -> vector<16x96xf32>
    %c0_12 = arith.constant 0 : index
    %c0_13 = arith.constant 0 : index
    %31 = vector.load %arg5[%c0_12, %c0_13] : memref<1x96xf32, #tpu.memory_space<vmem>>, vector<1x96xf32>
    %32 = vector.shape_cast %31 : vector<1x96xf32> to vector<96xf32>
    %33 = vector.shape_cast %32 : vector<96xf32> to vector<1x96xf32>
    %34 = vector.broadcast %33 : vector<1x96xf32> to vector<16x96xf32>
    %35 = arith.addf %30, %34 : vector<16x96xf32>
    %36 = vector.extract_strided_slice %35 {offsets = [0, 0], sizes = [16, 32], strides = [1, 1]} : vector<16x96xf32> to vector<16x32xf32>
    %37 = vector.shape_cast %36 : vector<16x32xf32> to vector<2x8x32xf32>
    %38 = vector.extract_strided_slice %35 {offsets = [0, 32], sizes = [16, 32], strides = [1, 1]} : vector<16x96xf32> to vector<16x32xf32>
    %39 = vector.shape_cast %38 : vector<16x32xf32> to vector<2x8x32xf32>
    %40 = vector.extract_strided_slice %35 {offsets = [0, 64], sizes = [16, 32], strides = [1, 1]} : vector<16x96xf32> to vector<16x32xf32>
    %41 = vector.shape_cast %40 : vector<16x32xf32> to vector<2x8x32xf32>
    %42 = vector.extract_strided_slice %37 {offsets = [0, 0, 0], sizes = [2, 8, 8], strides = [1, 1, 1]} : vector<2x8x32xf32> to vector<2x8x8xf32>
    %43 = vector.extract_strided_slice %39 {offsets = [0, 0, 0], sizes = [2, 8, 8], strides = [1, 1, 1]} : vector<2x8x32xf32> to vector<2x8x8xf32>
    %44 = vector.extract_strided_slice %41 {offsets = [0, 0, 0], sizes = [2, 8, 8], strides = [1, 1, 1]} : vector<2x8x32xf32> to vector<2x8x8xf32>
    "tpu.trace_start"() <{level = 10 : i32, message = "bqd,bkd->bqk"}> : () -> ()
    %cst_14 = arith.constant dense<0.000000e+00> : vector<2x8x8xf32>
    %45 = tpu.matmul %42, %43, %cst_14 {dimension_numbers = #tpu.dot_dimension_numbers<[2], [2], [1], [1], [0, 0, 0, 1, 1, 1], [0], [0]>} : vector<2x8x8xf32>, vector<2x8x8xf32>, vector<2x8x8xf32> -> vector<2x8x8xf32>
    "tpu.trace_stop"() : () -> ()
    %cst_15 = arith.constant 0.353553385 : f32
    %46 = vector.broadcast %cst_15 : f32 to vector<2x8x8xf32>
    %47 = arith.mulf %45, %46 : vector<2x8x8xf32>
    %cst_16 = arith.constant dense<0xFF800000> : vector<2x8xf32>
    %48 = vector.multi_reduction <maximumf>, %47, %cst_16 [2] : vector<2x8x8xf32> to vector<2x8xf32>
    %49 = vector.shape_cast %48 : vector<2x8xf32> to vector<2x8x1xf32>
    %50 = vector.broadcast %49 : vector<2x8x1xf32> to vector<2x8x8xf32>
    %51 = arith.subf %47, %50 : vector<2x8x8xf32>
    %52 = math.exp %51 : vector<2x8x8xf32>
    %cst_17 = arith.constant dense<0.000000e+00> : vector<2x8xf32>
    %53 = vector.multi_reduction <add>, %52, %cst_17 [2] : vector<2x8x8xf32> to vector<2x8xf32>
    %54 = vector.shape_cast %53 : vector<2x8xf32> to vector<2x8x1xf32>
    %55 = tpu.reciprocal %54 {approx = true} : vector<2x8x1xf32> -> vector<2x8x1xf32>
    %56 = vector.broadcast %55 : vector<2x8x1xf32> to vector<2x8x8xf32>
    %57 = arith.mulf %52, %56 : vector<2x8x8xf32>
    "tpu.trace_start"() <{level = 10 : i32, message = "bqk,bkd->bqd"}> : () -> ()
    %cst_18 = arith.constant dense<0.000000e+00> : vector<2x8x8xf32>
    %58 = tpu.matmul %57, %44, %cst_18 {dimension_numbers = #tpu.dot_dimension_numbers<[2], [1], [1], [2], [0, 0, 0, 1, 1, 2], [0], [0]>} : vector<2x8x8xf32>, vector<2x8x8xf32>, vector<2x8x8xf32> -> vector<2x8x8xf32>
    "tpu.trace_stop"() : () -> ()
    %59 = vector.extract_strided_slice %37 {offsets = [0, 0, 8], sizes = [2, 8, 8], strides = [1, 1, 1]} : vector<2x8x32xf32> to vector<2x8x8xf32>
    %60 = vector.extract_strided_slice %39 {offsets = [0, 0, 8], sizes = [2, 8, 8], strides = [1, 1, 1]} : vector<2x8x32xf32> to vector<2x8x8xf32>
    %61 = vector.extract_strided_slice %41 {offsets = [0, 0, 8], sizes = [2, 8, 8], strides = [1, 1, 1]} : vector<2x8x32xf32> to vector<2x8x8xf32>
    "tpu.trace_start"() <{level = 10 : i32, message = "bqd,bkd->bqk"}> : () -> ()
    %cst_19 = arith.constant dense<0.000000e+00> : vector<2x8x8xf32>
    %62 = tpu.matmul %59, %60, %cst_19 {dimension_numbers = #tpu.dot_dimension_numbers<[2], [2], [1], [1], [0, 0, 0, 1, 1, 1], [0], [0]>} : vector<2x8x8xf32>, vector<2x8x8xf32>, vector<2x8x8xf32> -> vector<2x8x8xf32>
    "tpu.trace_stop"() : () -> ()
    %cst_20 = arith.constant 0.353553385 : f32
    %63 = vector.broadcast %cst_20 : f32 to vector<2x8x8xf32>
    %64 = arith.mulf %62, %63 : vector<2x8x8xf32>
    %cst_21 = arith.constant dense<0xFF800000> : vector<2x8xf32>
    %65 = vector.multi_reduction <maximumf>, %64, %cst_21 [2] : vector<2x8x8xf32> to vector<2x8xf32>
    %66 = vector.shape_cast %65 : vector<2x8xf32> to vector<2x8x1xf32>
    %67 = vector.broadcast %66 : vector<2x8x1xf32> to vector<2x8x8xf32>
    %68 = arith.subf %64, %67 : vector<2x8x8xf32>
    %69 = math.exp %68 : vector<2x8x8xf32>
    %cst_22 = arith.constant dense<0.000000e+00> : vector<2x8xf32>
    %70 = vector.multi_reduction <add>, %69, %cst_22 [2] : vector<2x8x8xf32> to vector<2x8xf32>
    %71 = vector.shape_cast %70 : vector<2x8xf32> to vector<2x8x1xf32>
    %72 = tpu.reciprocal %71 {approx = true} : vector<2x8x1xf32> -> vector<2x8x1xf32>
    %73 = vector.broadcast %72 : vector<2x8x1xf32> to vector<2x8x8xf32>
    %74 = arith.mulf %69, %73 : vector<2x8x8xf32>
    "tpu.trace_start"() <{level = 10 : i32, message = "bqk,bkd->bqd"}> : () -> ()
    %cst_23 = arith.constant dense<0.000000e+00> : vector<2x8x8xf32>
    %75 = tpu.matmul %74, %61, %cst_23 {dimension_numbers = #tpu.dot_dimension_numbers<[2], [1], [1], [2], [0, 0, 0, 1, 1, 2], [0], [0]>} : vector<2x8x8xf32>, vector<2x8x8xf32>, vector<2x8x8xf32> -> vector<2x8x8xf32>
    "tpu.trace_stop"() : () -> ()
    %76 = vector.extract_strided_slice %37 {offsets = [0, 0, 16], sizes = [2, 8, 8], strides = [1, 1, 1]} : vector<2x8x32xf32> to vector<2x8x8xf32>
    %77 = vector.extract_strided_slice %39 {offsets = [0, 0, 16], sizes = [2, 8, 8], strides = [1, 1, 1]} : vector<2x8x32xf32> to vector<2x8x8xf32>
    %78 = vector.extract_strided_slice %41 {offsets = [0, 0, 16], sizes = [2, 8, 8], strides = [1, 1, 1]} : vector<2x8x32xf32> to vector<2x8x8xf32>
    "tpu.trace_start"() <{level = 10 : i32, message = "bqd,bkd->bqk"}> : () -> ()
    %cst_24 = arith.constant dense<0.000000e+00> : vector<2x8x8xf32>
    %79 = tpu.matmul %76, %77, %cst_24 {dimension_numbers = #tpu.dot_dimension_numbers<[2], [2], [1], [1], [0, 0, 0, 1, 1, 1], [0], [0]>} : vector<2x8x8xf32>, vector<2x8x8xf32>, vector<2x8x8xf32> -> vector<2x8x8xf32>
    "tpu.trace_stop"() : () -> ()
    %cst_25 = arith.constant 0.353553385 : f32
    %80 = vector.broadcast %cst_25 : f32 to vector<2x8x8xf32>
    %81 = arith.mulf %79, %80 : vector<2x8x8xf32>
    %cst_26 = arith.constant dense<0xFF800000> : vector<2x8xf32>
    %82 = vector.multi_reduction <maximumf>, %81, %cst_26 [2] : vector<2x8x8xf32> to vector<2x8xf32>
    %83 = vector.shape_cast %82 : vector<2x8xf32> to vector<2x8x1xf32>
    %84 = vector.broadcast %83 : vector<2x8x1xf32> to vector<2x8x8xf32>
    %85 = arith.subf %81, %84 : vector<2x8x8xf32>
    %86 = math.exp %85 : vector<2x8x8xf32>
    %cst_27 = arith.constant dense<0.000000e+00> : vector<2x8xf32>
    %87 = vector.multi_reduction <add>, %86, %cst_27 [2] : vector<2x8x8xf32> to vector<2x8xf32>
    %88 = vector.shape_cast %87 : vector<2x8xf32> to vector<2x8x1xf32>
    %89 = tpu.reciprocal %88 {approx = true} : vector<2x8x1xf32> -> vector<2x8x1xf32>
    %90 = vector.broadcast %89 : vector<2x8x1xf32> to vector<2x8x8xf32>
    %91 = arith.mulf %86, %90 : vector<2x8x8xf32>
    "tpu.trace_start"() <{level = 10 : i32, message = "bqk,bkd->bqd"}> : () -> ()
    %cst_28 = arith.constant dense<0.000000e+00> : vector<2x8x8xf32>
    %92 = tpu.matmul %91, %78, %cst_28 {dimension_numbers = #tpu.dot_dimension_numbers<[2], [1], [1], [2], [0, 0, 0, 1, 1, 2], [0], [0]>} : vector<2x8x8xf32>, vector<2x8x8xf32>, vector<2x8x8xf32> -> vector<2x8x8xf32>
    "tpu.trace_stop"() : () -> ()
    %93 = vector.extract_strided_slice %37 {offsets = [0, 0, 24], sizes = [2, 8, 8], strides = [1, 1, 1]} : vector<2x8x32xf32> to vector<2x8x8xf32>
    %94 = vector.extract_strided_slice %39 {offsets = [0, 0, 24], sizes = [2, 8, 8], strides = [1, 1, 1]} : vector<2x8x32xf32> to vector<2x8x8xf32>
    %95 = vector.extract_strided_slice %41 {offsets = [0, 0, 24], sizes = [2, 8, 8], strides = [1, 1, 1]} : vector<2x8x32xf32> to vector<2x8x8xf32>
    "tpu.trace_start"() <{level = 10 : i32, message = "bqd,bkd->bqk"}> : () -> ()
    %cst_29 = arith.constant dense<0.000000e+00> : vector<2x8x8xf32>
    %96 = tpu.matmul %93, %94, %cst_29 {dimension_numbers = #tpu.dot_dimension_numbers<[2], [2], [1], [1], [0, 0, 0, 1, 1, 1], [0], [0]>} : vector<2x8x8xf32>, vector<2x8x8xf32>, vector<2x8x8xf32> -> vector<2x8x8xf32>
    "tpu.trace_stop"() : () -> ()
    %cst_30 = arith.constant 0.353553385 : f32
    %97 = vector.broadcast %cst_30 : f32 to vector<2x8x8xf32>
    %98 = arith.mulf %96, %97 : vector<2x8x8xf32>
    %cst_31 = arith.constant dense<0xFF800000> : vector<2x8xf32>
    %99 = vector.multi_reduction <maximumf>, %98, %cst_31 [2] : vector<2x8x8xf32> to vector<2x8xf32>
    %100 = vector.shape_cast %99 : vector<2x8xf32> to vector<2x8x1xf32>
    %101 = vector.broadcast %100 : vector<2x8x1xf32> to vector<2x8x8xf32>
    %102 = arith.subf %98, %101 : vector<2x8x8xf32>
    %103 = math.exp %102 : vector<2x8x8xf32>
    %cst_32 = arith.constant dense<0.000000e+00> : vector<2x8xf32>
    %104 = vector.multi_reduction <add>, %103, %cst_32 [2] : vector<2x8x8xf32> to vector<2x8xf32>
    %105 = vector.shape_cast %104 : vector<2x8xf32> to vector<2x8x1xf32>
    %106 = tpu.reciprocal %105 {approx = true} : vector<2x8x1xf32> -> vector<2x8x1xf32>
    %107 = vector.broadcast %106 : vector<2x8x1xf32> to vector<2x8x8xf32>
    %108 = arith.mulf %103, %107 : vector<2x8x8xf32>
    "tpu.trace_start"() <{level = 10 : i32, message = "bqk,bkd->bqd"}> : () -> ()
    %cst_33 = arith.constant dense<0.000000e+00> : vector<2x8x8xf32>
    %109 = tpu.matmul %108, %95, %cst_33 {dimension_numbers = #tpu.dot_dimension_numbers<[2], [1], [1], [2], [0, 0, 0, 1, 1, 2], [0], [0]>} : vector<2x8x8xf32>, vector<2x8x8xf32>, vector<2x8x8xf32> -> vector<2x8x8xf32>
    "tpu.trace_stop"() : () -> ()
    %110 = tpu.concatenate %58, %75, %92, %109 in 2 : vector<2x8x8xf32>, vector<2x8x8xf32>, vector<2x8x8xf32>, vector<2x8x8xf32> -> vector<2x8x32xf32>
    %111 = vector.shape_cast %110 : vector<2x8x32xf32> to vector<16x32xf32>
    %c0_34 = arith.constant 0 : index
    %c0_35 = arith.constant 0 : index
    %112 = vector.load %arg6[%c0_34, %c0_35] : memref<32x32xf32, #tpu.memory_space<vmem>>, vector<32x32xf32>
    %cst_36 = arith.constant dense<0.000000e+00> : vector<16x32xf32>
    %113 = tpu.matmul %111, %112, %cst_36 {dimension_numbers = #tpu.dot_dimension_numbers<[1], [0], [0], [1], [0, 0, 1, 1], [], []>} : vector<16x32xf32>, vector<32x32xf32>, vector<16x32xf32> -> vector<16x32xf32>
    %c0_37 = arith.constant 0 : index
    %c0_38 = arith.constant 0 : index
    %114 = vector.load %arg7[%c0_37, %c0_38] : memref<1x32xf32, #tpu.memory_space<vmem>>, vector<1x32xf32>
    %115 = vector.shape_cast %114 : vector<1x32xf32> to vector<32xf32>
    %116 = vector.shape_cast %115 : vector<32xf32> to vector<1x32xf32>
    %117 = vector.broadcast %116 : vector<1x32xf32> to vector<16x32xf32>
    %118 = arith.addf %113, %117 : vector<16x32xf32>
    %119 = arith.addf %0, %118 : vector<16x32xf32>
    %c0_39 = arith.constant 0 : index
    %c0_40 = arith.constant 0 : index
    %120 = vector.load %arg8[%c0_39, %c0_40] : memref<1x32xf32, #tpu.memory_space<vmem>>, vector<1x32xf32>
    %121 = vector.shape_cast %120 : vector<1x32xf32> to vector<32xf32>
    %c0_41 = arith.constant 0 : index
    %c0_42 = arith.constant 0 : index
    %122 = vector.load %arg9[%c0_41, %c0_42] : memref<1x32xf32, #tpu.memory_space<vmem>>, vector<1x32xf32>
    %123 = vector.shape_cast %122 : vector<1x32xf32> to vector<32xf32>
    %cst_43 = arith.constant dense<0.000000e+00> : vector<16xf32>
    %124 = vector.multi_reduction <add>, %119, %cst_43 [1] : vector<16x32xf32> to vector<16xf32>
    %125 = vector.shape_cast %124 : vector<16xf32> to vector<16x1xf32>
    %cst_44 = arith.constant 3.200000e+01 : f32
    %126 = vector.broadcast %cst_44 : f32 to vector<16x1xf32>
    %127 = arith.divf %125, %126 : vector<16x1xf32>
    %128 = vector.broadcast %127 : vector<16x1xf32> to vector<16x32xf32>
    %129 = arith.subf %119, %128 : vector<16x32xf32>
    %130 = arith.mulf %129, %129 : vector<16x32xf32>
    %cst_45 = arith.constant dense<0.000000e+00> : vector<16xf32>
    %131 = vector.multi_reduction <add>, %130, %cst_45 [1] : vector<16x32xf32> to vector<16xf32>
    %132 = vector.shape_cast %131 : vector<16xf32> to vector<16x1xf32>
    %cst_46 = arith.constant 3.200000e+01 : f32
    %133 = vector.broadcast %cst_46 : f32 to vector<16x1xf32>
    %134 = arith.divf %132, %133 : vector<16x1xf32>
    %135 = vector.broadcast %127 : vector<16x1xf32> to vector<16x32xf32>
    %136 = arith.subf %119, %135 : vector<16x32xf32>
    %cst_47 = arith.constant 9.99999974E-6 : f32
    %137 = vector.broadcast %cst_47 : f32 to vector<16x1xf32>
    %138 = arith.addf %134, %137 : vector<16x1xf32>
    %139 = math.rsqrt %138 : vector<16x1xf32>
    %140 = vector.broadcast %139 : vector<16x1xf32> to vector<16x32xf32>
    %141 = arith.mulf %136, %140 : vector<16x32xf32>
    %142 = vector.shape_cast %121 : vector<32xf32> to vector<1x32xf32>
    %143 = vector.broadcast %142 : vector<1x32xf32> to vector<16x32xf32>
    %144 = arith.mulf %141, %143 : vector<16x32xf32>
    %145 = vector.shape_cast %123 : vector<32xf32> to vector<1x32xf32>
    %146 = vector.broadcast %145 : vector<1x32xf32> to vector<16x32xf32>
    %147 = arith.addf %144, %146 : vector<16x32xf32>
    %c0_48 = arith.constant 0 : index
    %c0_49 = arith.constant 0 : index
    %148 = vector.load %arg10[%c0_48, %c0_49] : memref<32x64xf32, #tpu.memory_space<vmem>>, vector<32x64xf32>
    %cst_50 = arith.constant dense<0.000000e+00> : vector<16x64xf32>
    %149 = tpu.matmul %147, %148, %cst_50 {dimension_numbers = #tpu.dot_dimension_numbers<[1], [0], [0], [1], [0, 0, 1, 1], [], []>} : vector<16x32xf32>, vector<32x64xf32>, vector<16x64xf32> -> vector<16x64xf32>
    %c0_51 = arith.constant 0 : index
    %c0_52 = arith.constant 0 : index
    %150 = vector.load %arg11[%c0_51, %c0_52] : memref<1x64xf32, #tpu.memory_space<vmem>>, vector<1x64xf32>
    %151 = vector.shape_cast %150 : vector<1x64xf32> to vector<64xf32>
    %152 = vector.shape_cast %151 : vector<64xf32> to vector<1x64xf32>
    %153 = vector.broadcast %152 : vector<1x64xf32> to vector<16x64xf32>
    %154 = arith.addf %149, %153 : vector<16x64xf32>
    %cst_53 = arith.constant 5.000000e-01 : f32
    %155 = vector.broadcast %cst_53 : f32 to vector<16x64xf32>
    %156 = arith.mulf %155, %154 : vector<16x64xf32>
    %cst_54 = arith.constant 0.707106769 : f32
    %157 = vector.broadcast %cst_54 : f32 to vector<16x64xf32>
    %158 = arith.mulf %154, %157 : vector<16x64xf32>
    %159 = math.erf %158 : vector<16x64xf32>
    %cst_55 = arith.constant 1.000000e+00 : f32
    %160 = vector.broadcast %cst_55 : f32 to vector<16x64xf32>
    %161 = arith.addf %160, %159 : vector<16x64xf32>
    %162 = arith.mulf %156, %161 : vector<16x64xf32>
    %c0_56 = arith.constant 0 : index
    %c0_57 = arith.constant 0 : index
    %163 = vector.load %arg12[%c0_56, %c0_57] : memref<64x32xf32, #tpu.memory_space<vmem>>, vector<64x32xf32>
    %cst_58 = arith.constant dense<0.000000e+00> : vector<16x32xf32>
    %164 = tpu.matmul %162, %163, %cst_58 {dimension_numbers = #tpu.dot_dimension_numbers<[1], [0], [0], [1], [0, 0, 1, 1], [], []>} : vector<16x64xf32>, vector<64x32xf32>, vector<16x32xf32> -> vector<16x32xf32>
    %c0_59 = arith.constant 0 : index
    %c0_60 = arith.constant 0 : index
    %165 = vector.load %arg13[%c0_59, %c0_60] : memref<1x32xf32, #tpu.memory_space<vmem>>, vector<1x32xf32>
    %166 = vector.shape_cast %165 : vector<1x32xf32> to vector<32xf32>
    %167 = vector.shape_cast %166 : vector<32xf32> to vector<1x32xf32>
    %168 = vector.broadcast %167 : vector<1x32xf32> to vector<16x32xf32>
    %169 = arith.addf %164, %168 : vector<16x32xf32>
    %170 = arith.addf %119, %169 : vector<16x32xf32>
    %c0_61 = arith.constant 0 : index
    %c0_62 = arith.constant 0 : index
    %171 = vector.load %arg14[%c0_61, %c0_62] : memref<16x32xf32, #tpu.memory_space<vmem>>, vector<16x32xf32>
    tpu.vector_store %arg14[%c0_61, %c0_62], %170 {strides = array<i32>} : memref<16x32xf32, #tpu.memory_space<vmem>>, vector<16x32xf32>,
    return
  }
  func.func @transform_0(%arg0: i32) -> (i32, i32) {
    %c0_i32 = arith.constant 0 : i32
    %c0_i32_0 = arith.constant 0 : i32
    return %arg0, %c0_i32 : i32, i32
  }
  func.func @transform_1(%arg0: i32) -> (i32, i32) {
    %c0_i32 = arith.constant 0 : i32
    %c0_i32_0 = arith.constant 0 : i32
    %c0_i32_1 = arith.constant 0 : i32
    return %c0_i32, %c0_i32_0 : i32, i32
  }
  func.func @transform_2(%arg0: i32) -> (i32, i32) {
    %c0_i32 = arith.constant 0 : i32
    %c0_i32_0 = arith.constant 0 : i32
    %c0_i32_1 = arith.constant 0 : i32
    return %c0_i32, %c0_i32_0 : i32, i32
  }
  func.func @transform_3(%arg0: i32) -> (i32, i32) {
    %c0_i32 = arith.constant 0 : i32
    %c0_i32_0 = arith.constant 0 : i32
    %c0_i32_1 = arith.constant 0 : i32
    return %c0_i32, %c0_i32_0 : i32, i32
  }
  func.func @transform_4(%arg0: i32) -> (i32, i32) {
    %c0_i32 = arith.constant 0 : i32
    %c0_i32_0 = arith.constant 0 : i32
    %c0_i32_1 = arith.constant 0 : i32
    return %c0_i32, %c0_i32_0 : i32, i32
  }
  func.func @transform_5(%arg0: i32) -> (i32, i32) {
    %c0_i32 = arith.constant 0 : i32
    %c0_i32_0 = arith.constant 0 : i32
    %c0_i32_1 = arith.constant 0 : i32
    return %c0_i32, %c0_i32_0 : i32, i32
  }
  func.func @transform_6(%arg0: i32) -> (i32, i32) {
    %c0_i32 = arith.constant 0 : i32
    %c0_i32_0 = arith.constant 0 : i32
    %c0_i32_1 = arith.constant 0 : i32
    return %c0_i32, %c0_i32_0 : i32, i32
  }
  func.func @transform_7(%arg0: i32) -> (i32, i32) {
    %c0_i32 = arith.constant 0 : i32
    %c0_i32_0 = arith.constant 0 : i32
    %c0_i32_1 = arith.constant 0 : i32
    return %c0_i32, %c0_i32_0 : i32, i32
  }
  func.func @transform_8(%arg0: i32) -> (i32, i32) {
    %c0_i32 = arith.constant 0 : i32
    %c0_i32_0 = arith.constant 0 : i32
    %c0_i32_1 = arith.constant 0 : i32
    return %c0_i32, %c0_i32_0 : i32, i32
  }
  func.func @transform_9(%arg0: i32) -> (i32, i32) {
    %c0_i32 = arith.constant 0 : i32
    %c0_i32_0 = arith.constant 0 : i32
    %c0_i32_1 = arith.constant 0 : i32
    return %c0_i32, %c0_i32_0 : i32, i32
  }
  func.func @transform_10(%arg0: i32) -> (i32, i32) {
    %c0_i32 = arith.constant 0 : i32
    %c0_i32_0 = arith.constant 0 : i32
    %c0_i32_1 = arith.constant 0 : i32
    return %c0_i32, %c0_i32_0 : i32, i32
  }
  func.func @transform_11(%arg0: i32) -> (i32, i32) {
    %c0_i32 = arith.constant 0 : i32
    %c0_i32_0 = arith.constant 0 : i32
    %c0_i32_1 = arith.constant 0 : i32
    return %c0_i32, %c0_i32_0 : i32, i32
  }
  func.func @transform_12(%arg0: i32) -> (i32, i32) {
    %c0_i32 = arith.constant 0 : i32
    %c0_i32_0 = arith.constant 0 : i32
    %c0_i32_1 = arith.constant 0 : i32
    return %c0_i32, %c0_i32_0 : i32, i32
  }
  func.func @transform_13(%arg0: i32) -> (i32, i32) {
    %c0_i32 = arith.constant 0 : i32
    %c0_i32_0 = arith.constant 0 : i32
    return %arg0, %c0_i32 : i32, i32
  }
}

</mosaic_0001>

<llo_original>
// kernel: tpu_custom_call.1
$region0: #{tpu_custom_call.1}
  #allocation0 [shape = 'u32[]', space=smem, size = 0x4, offset = 0x4, fixed_abs, tag = 'smem constant byte address 0x4 - core index']
  #allocation1 [shape = 'u32[144,128]{1,0:T(1,128)}', space=vmem, size = 0x12000, scoped, tag = 'internal scratch']
  %s0 = inlined_call_operand.hbm [shape: f32[16,32], index: 0, kind: input, shape index: {}]
  %s1 = inlined_call_operand.vmem [shape: f32[1,32], index: 1, kind: input, shape index: {}]
  %s2 = inlined_call_operand.vmem [shape: f32[1,32], index: 2, kind: input, shape index: {}]
  %s3 = inlined_call_operand.vmem [shape: f32[32,96], index: 3, kind: input, shape index: {}]
  %s4 = inlined_call_operand.vmem [shape: f32[1,96], index: 4, kind: input, shape index: {}]
  %s5 = inlined_call_operand.vmem [shape: f32[32,32], index: 5, kind: input, shape index: {}]
  %s6 = inlined_call_operand.vmem [shape: f32[1,32], index: 6, kind: input, shape index: {}]
  %s7 = inlined_call_operand.vmem [shape: f32[1,32], index: 7, kind: input, shape index: {}]
  %s8 = inlined_call_operand.vmem [shape: f32[1,32], index: 8, kind: input, shape index: {}]
  %s9 = inlined_call_operand.vmem [shape: f32[32,64], index: 9, kind: input, shape index: {}]
  %s10 = inlined_call_operand.vmem [shape: f32[1,64], index: 10, kind: input, shape index: {}]
  %s11 = inlined_call_operand.vmem [shape: f32[64,32], index: 11, kind: input, shape index: {}]
  %s12 = inlined_call_operand.vmem [shape: f32[1,32], index: 12, kind: input, shape index: {}]
  %s13 = inlined_call_operand.hbm [shape: f32[16,32], index: 13, kind: output, shape index: {}]
  %s14 = sld [smem:[#allocation0]]
  $region66: #{tpu_custom_call.1} parent=0
    _
  %s16 = ssub.s32 1, %s14
  %s17 = scalar_select 0, %s16, %s14
  $region1: #{tpu_custom_call.1} parent=0
    #allocation2 [shape = 'u8[8192]{0}', space=vmem, size = 0x2000, scoped, tag = 'input window, operand 0, single buffered']
    #allocation3 [shape = 's32[1]{0}', space=sflag, size = 0x4, scoped, tag = 'scoped memory for tpu_custom_call.1']
    #allocation4 [shape = 's32[1]{0}', space=sflag, size = 0x4, scoped, tag = 'scoped memory for tpu_custom_call.1']
    #allocation5 [shape = 'u8[8192]{0}', space=vmem, size = 0x2000, scoped, tag = 'output window, operand 0, single buffered']
    %18 = vsyncpa [#allocation3], 0
    %19 = vsyncpa [#allocation4], 0
    // Predicated region
    $region2: #{tpu_custom_call.1} parent=1 // pred_check
      _
    $region3: #{tpu_custom_call.1} parent=1 // pred_check_branch
      %21 = sbr.rel (0) target = $region5
    $region4: #{tpu_custom_call.1} parent=1 // pred_region
      %s23 = ssub.s32 256, 256
      %24 = vsyncadd [#allocation3], %s23
      %s25 = sshll.u32 [#allocation2], 4
      %s26 = int_to_ptr.vmem [resolvable:$true] %s25
      %31 = dma.hbm_to_vmem [thread:$0]  %s0, 256, %s26, [#allocation3], 128, 128, 8
    $region5: #{tpu_custom_call.1} parent=1 // pred_fallthru
      _
    // Predicated region
    $region6: #{tpu_custom_call.1} parent=1 // pred_check
      _
    $region7: #{tpu_custom_call.1} parent=1 // pred_check_branch
      %33 = sbr.rel (0) target = $region9
    $region8: #{tpu_custom_call.1} parent=1 // pred_region
      _
    $region9: #{tpu_custom_call.1} parent=1 // pred_fallthru
      _
    // Predicated region
    $region10: #{tpu_custom_call.1} parent=1 // pred_check
      _
    $region11: #{tpu_custom_call.1} parent=1 // pred_check_branch
      %35 = sbr.rel (0) target = $region13
    $region12: #{tpu_custom_call.1} parent=1 // pred_region
      _
    $region13: #{tpu_custom_call.1} parent=1 // pred_fallthru
      _
    // Predicated region
    $region14: #{tpu_custom_call.1} parent=1 // pred_check
      _
    $region15: #{tpu_custom_call.1} parent=1 // pred_check_branch
      %37 = sbr.rel (0) target = $region17
    $region16: #{tpu_custom_call.1} parent=1 // pred_region
      _
    $region17: #{tpu_custom_call.1} parent=1 // pred_fallthru
      _
    // Predicated region
    $region18: #{tpu_custom_call.1} parent=1 // pred_check
      _
    $region19: #{tpu_custom_call.1} parent=1 // pred_check_branch
      %39 = sbr.rel (0) target = $region21
    $region20: #{tpu_custom_call.1} parent=1 // pred_region
      _
    $region21: #{tpu_custom_call.1} parent=1 // pred_fallthru
      _
    // Predicated region
    $region22: #{tpu_custom_call.1} parent=1 // pred_check
      _
    $region23: #{tpu_custom_call.1} parent=1 // pred_check_branch
      %41 = sbr.rel (0) target = $region25
    $region24: #{tpu_custom_call.1} parent=1 // pred_region
      _
    $region25: #{tpu_custom_call.1} parent=1 // pred_fallthru
      _
    // Predicated region
    $region26: #{tpu_custom_call.1} parent=1 // pred_check
      _
    $region27: #{tpu_custom_call.1} parent=1 // pred_check_branch
      %43 = sbr.rel (0) target = $region29
    $region28: #{tpu_custom_call.1} parent=1 // pred_region
      _
    $region29: #{tpu_custom_call.1} parent=1 // pred_fallthru
      _
    // Predicated region
    $region30: #{tpu_custom_call.1} parent=1 // pred_check
      _
    $region31: #{tpu_custom_call.1} parent=1 // pred_check_branch
      %45 = sbr.rel (0) target = $region33
    $region32: #{tpu_custom_call.1} parent=1 // pred_region
      _
    $region33: #{tpu_custom_call.1} parent=1 // pred_fallthru
      _
    // Predicated region
    $region34: #{tpu_custom_call.1} parent=1 // pred_check
      _
    $region35: #{tpu_custom_call.1} parent=1 // pred_check_branch
      %47 = sbr.rel (0) target = $region37
    $region36: #{tpu_custom_call.1} parent=1 // pred_region
      _
    $region37: #{tpu_custom_call.1} parent=1 // pred_fallthru
      _
    // Predicated region
    $region38: #{tpu_custom_call.1} parent=1 // pred_check
      _
    $region39: #{tpu_custom_call.1} parent=1 // pred_check_branch
      %49 = sbr.rel (0) target = $region41
    $region40: #{tpu_custom_call.1} parent=1 // pred_region
      _
    $region41: #{tpu_custom_call.1} parent=1 // pred_fallthru
      _
    // Predicated region
    $region42: #{tpu_custom_call.1} parent=1 // pred_check
      _
    $region43: #{tpu_custom_call.1} parent=1 // pred_check_branch
      %51 = sbr.rel (0) target = $region45
    $region44: #{tpu_custom_call.1} parent=1 // pred_region
      _
    $region45: #{tpu_custom_call.1} parent=1 // pred_fallthru
      _
    // Predicated region
    $region46: #{tpu_custom_call.1} parent=1 // pred_check
      _
    $region47: #{tpu_custom_call.1} parent=1 // pred_check_branch
      %53 = sbr.rel (0) target = $region49
    $region48: #{tpu_custom_call.1} parent=1 // pred_region
      _
    $region49: #{tpu_custom_call.1} parent=1 // pred_fallthru
      _
    // Predicated region
    $region50: #{tpu_custom_call.1} parent=1 // pred_check
      _
    $region51: #{tpu_custom_call.1} parent=1 // pred_check_branch
      %55 = sbr.rel (0) target = $region53
    $region52: #{tpu_custom_call.1} parent=1 // pred_region
      _
    $region53: #{tpu_custom_call.1} parent=1 // pred_fallthru
      _
    // Predicated region
    $region54: #{tpu_custom_call.1} parent=1 // pred_check
      _
    $region55: #{tpu_custom_call.1} parent=1 // pred_check_branch
      %57 = sbr.rel (0) target = $region57
    $region56: #{tpu_custom_call.1} parent=1 // pred_region
      %58 = dma.done [#allocation3], 256
    $region57: #{tpu_custom_call.1} parent=1 // pred_fallthru
      _
    %v59 = vld [vmem:[#allocation2] sm:$0xff]
    %v60 = vld [vmem:[#allocation2 + $0x8] sm:$0xff]
    %v61 = vld [vmem:[%s1] sm:$0x1]
    %v62 = vld [vmem:[%s2] sm:$0x1]
    %vm63 = vcmask 261120
    %v64 = vsel %vm63, %v59, 0.0
    %65 = vadd.xlane.f32.xlu0 %v64
    %v66 = vpop.xlane.xlu0 %65
    %v67 = vsel %vm63, %v60, 0.0
    %68 = vadd.xlane.f32.xlu0 %v67
    %v69 = vpop.xlane.xlu0 %68
    %v70 = vrcp.pop 32.0
    %v71 = vmul.f32 %v66, %v70
    %v72 = vmul.f32 %v69, %v70
    %v73 = vsub.f32 %v59, %v71
    %v74 = vsub.f32 %v60, %v72
    %v75 = vmul.f32 %v73, %v73
    %v76 = vmul.f32 %v74, %v74
    %v77 = vsel %vm63, %v75, 0.0
    %78 = vadd.xlane.f32.xlu0 %v77
    %v79 = vpop.xlane.xlu0 %78
    %v80 = vsel %vm63, %v76, 0.0
    %81 = vadd.xlane.f32.xlu0 %v80
    %v82 = vpop.xlane.xlu0 %81
    %v83 = vmul.f32 %v79, %v70
    %v84 = vmul.f32 %v82, %v70
    %v85 = vadd.f32 %v83, 1e-05
    %v86 = vadd.f32 %v84, 1e-05
    %v87 = vrsqrt.pop %v85
    %v88 = vrsqrt.pop %v86
    %v89 = vmul.f32 %v73, %v87
    %v90 = vmul.f32 %v74, %v88
    %v92 = vlaneseq
    %v93 = vshrl.u32 %v92, 7
    %v94 = vsub.s32 0, %v93
    %v95 = vrot.slane %v61, %v94
    %v97 = vmul.f32 %v89, %v95
    %v98 = vmul.f32 %v90, %v95
    %v100 = vlaneseq
    %v101 = vshrl.u32 %v100, 7
    %v102 = vsub.s32 0, %v101
    %v103 = vrot.slane %v62, %v102
    %v105 = vadd.f32 %v97, %v103
    %v106 = vadd.f32 %v98, %v103
    %v107 = vld [vmem:[%s3] sm:$0xff]
    %v108 = vld [vmem:[%s3 + $0x8] sm:$0xff]
    %v109 = vld [vmem:[%s3 + $0x10] sm:$0xff]
    %v110 = vld [vmem:[%s3 + $0x18] sm:$0xff]
    %v111 = vld [vmem:[%s4] sm:$0x1]
    %v113 = vlaneseq
    %v114 = vshrl.u32 %v113, 7
    %v115 = vsub.s32 0, %v114
    %v116 = vrot.slane %v111, %v115
    %v119 = vsel %vm63, %v105, 0
    %v122 = vsel %vm63, %v106, 0
    %124 = vmatprep.subr.mxu0 0.0
    %125 = vmatpush1.msra.mxu0 0.0
    %126 = vmatprep.subr.mxu0 0.0
    %127 = vmatpush1.msra.mxu0 0.0
    %128 = vmatprep.subr.mxu0 0.0
    %129 = vmatpush1.msra.mxu0 0.0
    %130 = vmatprep.subr.mxu0 0.0
    %131 = vmatpush1.msra.mxu0 0.0
    %132 = vmatprep.subr.mxu0 0.0
    %133 = vmatpush1.msra.mxu0 0.0
    %134 = vmatprep.subr.mxu0 0.0
    %135 = vmatpush1.msra.mxu0 0.0
    %136 = vmatprep.subr.mxu0 0.0
    %137 = vmatpush1.msra.mxu0 0.0
    %138 = vmatprep.subr.mxu0 0.0
    %139 = vmatpush1.msra.mxu0 0.0
    %140 = vmatprep.subr.mxu0 0.0
    %141 = vmatpush1.msra.mxu0 0.0
    %142 = vmatprep.subr.mxu0 0.0
    %143 = vmatpush1.msra.mxu0 0.0
    %144 = vmatprep.subr.mxu0 0.0
    %145 = vmatpush1.msra.mxu0 0.0
    %146 = vmatprep.subr.mxu0 0.0
    %147 = vmatpush1.msra.mxu0 0.0
    %148 = vmatprep.subr.mxu0 0.0
    %149 = vmatpush1.msra.mxu0 %v110
    %150 = vmatprep.subr.mxu0 0.0
    %151 = vmatpush1.msra.mxu0 %v109
    %152 = vmatprep.subr.mxu0 0.0
    %153 = vmatpush1.msra.mxu0 %v108
    %154 = vmatprep.subr.mxu0 0.0
    %155 = vmatpush1.msra.mxu0 %v107
    %156 = vmatprep.subr.mxu0 0.0
    %157 = vmatpush2.msra.mxu0 0.0
    %158 = vmatprep.subr.mxu0 0.0
    %159 = vmatpush2.msra.mxu0 0.0
    %160 = vmatprep.subr.mxu0 0.0
    %161 = vmatpush2.msra.mxu0 0.0
    %162 = vmatprep.subr.mxu0 0.0
    %163 = vmatpush2.msra.mxu0 0.0
    %164 = vmatprep.subr.mxu0 0.0
    %165 = vmatpush2.msra.mxu0 0.0
    %166 = vmatprep.subr.mxu0 0.0
    %167 = vmatpush2.msra.mxu0 0.0
    %168 = vmatprep.subr.mxu0 0.0
    %169 = vmatpush2.msra.mxu0 0.0
    %170 = vmatprep.subr.mxu0 0.0
    %171 = vmatpush2.msra.mxu0 0.0
    %172 = vmatprep.subr.mxu0 0.0
    %173 = vmatpush2.msra.mxu0 0.0
    %174 = vmatprep.subr.mxu0 0.0
    %175 = vmatpush2.msra.mxu0 0.0
    %176 = vmatprep.subr.mxu0 0.0
    %177 = vmatpush2.msra.mxu0 0.0
    %178 = vmatprep.subr.mxu0 0.0
    %179 = vmatpush2.msra.mxu0 0.0
    %180 = vmatprep.subr.mxu0 0.0
    %181 = vmatpush2.msra.mxu0 0.0
    %182 = vmatprep.subr.mxu0 0.0
    %183 = vmatpush2.msra.mxu0 0.0
    %184 = vmatprep.subr.mxu0 0.0
    %185 = vmatpush2.msra.mxu0 0.0
    %186 = vmatprep.subr.mxu0 0.0
    %187 = vmatpush2.msra.mxu0 0.0
    %188 = vmatprep.mubr.f32.mxu0 0.0
    %189 = vmatmul.mubr.f32.gmra.mxu0 %v119
    %v190 = vpop.f32.mrf.mxu0
    %v191 = vadd.f32 %v116, %v190
    %v192 = vpop.f32.mrf.mxu0
    %193 = vmatprep.mubr.f32.mxu0 0.0
    %194 = vmatmul.mubr.f32.gmra.mxu0 %v122
    %v195 = vpop.f32.mrf.mxu0
    %v196 = vadd.f32 %v116, %v195
    %v197 = vpop.f32.mrf.mxu0
    %198 = vdwg.mxu0
    %200 = vrot.lane.b32.xlu0 %v191, 96
    %v201 = vpop.permute.xlu0 %200
    %vm202 = vcmask 64512
    %v203 = vsel %vm202, %v191, 0
    %v205 = vsel %vm202, %v201, 0
    %207 = vmatprep.subr.mxu0 0.0
    %208 = vmatpush1.xpose.msra.mxu0 0.0
    %209 = vmatprep.subr.mxu0 0.0
    %210 = vmatpush1.xpose.msra.mxu0 0.0
    %211 = vmatprep.subr.mxu0 0.0
    %212 = vmatpush1.xpose.msra.mxu0 0.0
    %213 = vmatprep.subr.mxu0 0.0
    %214 = vmatpush1.xpose.msra.mxu0 0.0
    %215 = vmatprep.subr.mxu0 0.0
    %216 = vmatpush1.xpose.msra.mxu0 0.0
    %217 = vmatprep.subr.mxu0 0.0
    %218 = vmatpush1.xpose.msra.mxu0 0.0
    %219 = vmatprep.subr.mxu0 0.0
    %220 = vmatpush1.xpose.msra.mxu0 0.0
    %221 = vmatprep.subr.mxu0 0.0
    %222 = vmatpush1.xpose.msra.mxu0 0.0
    %223 = vmatprep.subr.mxu0 0.0
    %224 = vmatpush1.xpose.msra.mxu0 0.0
    %225 = vmatprep.subr.mxu0 0.0
    %226 = vmatpush1.xpose.msra.mxu0 0.0
    %227 = vmatprep.subr.mxu0 0.0
    %228 = vmatpush1.xpose.msra.mxu0 0.0
    %229 = vmatprep.subr.mxu0 0.0
    %230 = vmatpush1.xpose.msra.mxu0 0.0
    %231 = vmatprep.subr.mxu0 0.0
    %232 = vmatpush1.xpose.msra.mxu0 0.0
    %233 = vmatprep.subr.mxu0 0.0
    %234 = vmatpush1.xpose.msra.mxu0 0.0
    %235 = vmatprep.subr.mxu0 0.0
    %236 = vmatpush1.xpose.msra.mxu0 0.0
    %237 = vmatprep.subr.mxu0 0.0
    %238 = vmatpush1.xpose.msra.mxu0 %v205
    %239 = vmatprep.subr.mxu0 0.0
    %240 = vmatpush2.xpose.msra.mxu0 0.0
    %241 = vmatprep.subr.mxu0 0.0
    %242 = vmatpush2.xpose.msra.mxu0 0.0
    %243 = vmatprep.subr.mxu0 0.0
    %244 = vmatpush2.xpose.msra.mxu0 0.0
    %245 = vmatprep.subr.mxu0 0.0
    %246 = vmatpush2.xpose.msra.mxu0 0.0
    %247 = vmatprep.subr.mxu0 0.0
    %248 = vmatpush2.xpose.msra.mxu0 0.0
    %249 = vmatprep.subr.mxu0 0.0
    %250 = vmatpush2.xpose.msra.mxu0 0.0
    %251 = vmatprep.subr.mxu0 0.0
    %252 = vmatpush2.xpose.msra.mxu0 0.0
    %253 = vmatprep.subr.mxu0 0.0
    %254 = vmatpush2.xpose.msra.mxu0 0.0
    %255 = vmatprep.subr.mxu0 0.0
    %256 = vmatpush2.xpose.msra.mxu0 0.0
    %257 = vmatprep.subr.mxu0 0.0
    %258 = vmatpush2.xpose.msra.mxu0 0.0
    %259 = vmatprep.subr.mxu0 0.0
    %260 = vmatpush2.xpose.msra.mxu0 0.0
    %261 = vmatprep.subr.mxu0 0.0
    %262 = vmatpush2.xpose.msra.mxu0 0.0
    %263 = vmatprep.subr.mxu0 0.0
    %264 = vmatpush2.xpose.msra.mxu0 0.0
    %265 = vmatprep.subr.mxu0 0.0
    %266 = vmatpush2.xpose.msra.mxu0 0.0
    %267 = vmatprep.subr.mxu0 0.0
    %268 = vmatpush2.xpose.msra.mxu0 0.0
    %269 = vmatprep.subr.mxu0 0.0
    %270 = vmatpush2.xpose.msra.mxu0 0.0
    %271 = vmatprep.mubr.f32.mxu0 0.0
    %272 = vmatmul.mubr.f32.gmra.mxu0 %v203
    %v273 = vpop.f32.mrf.mxu0
    %v274 = vadd.f32 0.0, %v273
    %v275 = vpop.f32.mrf.mxu0
    %276 = vdwg.mxu0
    %278 = vrot.lane.b32.xlu0 %v196, 96
    %v279 = vpop.permute.xlu0 %278
    %v280 = vsel %vm202, %v196, 0
    %v282 = vsel %vm202, %v279, 0
    %284 = vmatprep.subr.mxu0 0.0
    %285 = vmatpush1.xpose.msra.mxu0 0.0
    %286 = vmatprep.subr.mxu0 0.0
    %287 = vmatpush1.xpose.msra.mxu0 0.0
    %288 = vmatprep.subr.mxu0 0.0
    %289 = vmatpush1.xpose.msra.mxu0 0.0
    %290 = vmatprep.subr.mxu0 0.0
    %291 = vmatpush1.xpose.msra.mxu0 0.0
    %292 = vmatprep.subr.mxu0 0.0
    %293 = vmatpush1.xpose.msra.mxu0 0.0
    %294 = vmatprep.subr.mxu0 0.0
    %295 = vmatpush1.xpose.msra.mxu0 0.0
    %296 = vmatprep.subr.mxu0 0.0
    %297 = vmatpush1.xpose.msra.mxu0 0.0
    %298 = vmatprep.subr.mxu0 0.0
    %299 = vmatpush1.xpose.msra.mxu0 0.0
    %300 = vmatprep.subr.mxu0 0.0
    %301 = vmatpush1.xpose.msra.mxu0 0.0
    %302 = vmatprep.subr.mxu0 0.0
    %303 = vmatpush1.xpose.msra.mxu0 0.0
    %304 = vmatprep.subr.mxu0 0.0
    %305 = vmatpush1.xpose.msra.mxu0 0.0
    %306 = vmatprep.subr.mxu0 0.0
    %307 = vmatpush1.xpose.msra.mxu0 0.0
    %308 = vmatprep.subr.mxu0 0.0
    %309 = vmatpush1.xpose.msra.mxu0 0.0
    %310 = vmatprep.subr.mxu0 0.0
    %311 = vmatpush1.xpose.msra.mxu0 0.0
    %312 = vmatprep.subr.mxu0 0.0
    %313 = vmatpush1.xpose.msra.mxu0 0.0
    %314 = vmatprep.subr.mxu0 0.0
    %315 = vmatpush1.xpose.msra.mxu0 %v282
    %316 = vmatprep.subr.mxu0 0.0
    %317 = vmatpush2.xpose.msra.mxu0 0.0
    %318 = vmatprep.subr.mxu0 0.0
    %319 = vmatpush2.xpose.msra.mxu0 0.0
    %320 = vmatprep.subr.mxu0 0.0
    %321 = vmatpush2.xpose.msra.mxu0 0.0
    %322 = vmatprep.subr.mxu0 0.0
    %323 = vmatpush2.xpose.msra.mxu0 0.0
    %324 = vmatprep.subr.mxu0 0.0
    %325 = vmatpush2.xpose.msra.mxu0 0.0
    %326 = vmatprep.subr.mxu0 0.0
    %327 = vmatpush2.xpose.msra.mxu0 0.0
    %328 = vmatprep.subr.mxu0 0.0
    %329 = vmatpush2.xpose.msra.mxu0 0.0
    %330 = vmatprep.subr.mxu0 0.0
    %331 = vmatpush2.xpose.msra.mxu0 0.0
    %332 = vmatprep.subr.mxu0 0.0
    %333 = vmatpush2.xpose.msra.mxu0 0.0
    %334 = vmatprep.subr.mxu0 0.0
    %335 = vmatpush2.xpose.msra.mxu0 0.0
    %336 = vmatprep.subr.mxu0 0.0
    %337 = vmatpush2.xpose.msra.mxu0 0.0
    %338 = vmatprep.subr.mxu0 0.0
    %339 = vmatpush2.xpose.msra.mxu0 0.0
    %340 = vmatprep.subr.mxu0 0.0
    %341 = vmatpush2.xpose.msra.mxu0 0.0
    %342 = vmatprep.subr.mxu0 0.0
    %343 = vmatpush2.xpose.msra.mxu0 0.0
    %344 = vmatprep.subr.mxu0 0.0
    %345 = vmatpush2.xpose.msra.mxu0 0.0
    %346 = vmatprep.subr.mxu0 0.0
    %347 = vmatpush2.xpose.msra.mxu0 0.0
    %348 = vmatprep.mubr.f32.mxu0 0.0
    %349 = vmatmul.mubr.f32.gmra.mxu0 %v280
    %v350 = vpop.f32.mrf.mxu0
    %v351 = vadd.f32 0.0, %v350
    %v352 = vpop.f32.mrf.mxu0
    %353 = vdwg.mxu0
    %v354 = vmul.f32 %v274, 0.35355338
    %v355 = vmul.f32 %v351, 0.35355338
    %v356 = vsel %vm202, %v354, -inf
    %357 = vmax.xlane.f32.xlu0 %v356
    %v358 = vpop.xlane.xlu0 %357
    %v359 = vsel %vm202, %v355, -inf
    %360 = vmax.xlane.f32.xlu0 %v359
    %v361 = vpop.xlane.xlu0 %360
    %v362 = vsub.f32 %v354, %v358
    %v363 = vsub.f32 %v355, %v361
    %v364 = vmul.f32 %v362, 1.442695
    %v365 = vpow.pop %v364
    %v366 = vmul.f32 %v363, 1.442695
    %v367 = vpow.pop %v366
    %v368 = vsel %vm202, %v365, 0.0
    %369 = vadd.xlane.f32.xlu0 %v368
    %v370 = vpop.xlane.xlu0 %369
    %v371 = vsel %vm202, %v367, 0.0
    %372 = vadd.xlane.f32.xlu0 %v371
    %v373 = vpop.xlane.xlu0 %372
    %v374 = vrcp.pop %v370
    %v375 = vrcp.pop %v373
    %v376 = vmul.f32 %v365, %v374
    %v377 = vmul.f32 %v367, %v375
    %378 = vrot.lane.b32.xlu0 %v191, 64
    %v379 = vpop.permute.xlu0 %378
    %v382 = vsel %vm202, %v376, 0
    %384 = vmatprep.subr.mxu0 0.0
    %385 = vmatpush1.msra.mxu0 0.0
    %386 = vmatprep.subr.mxu0 0.0
    %387 = vmatpush1.msra.mxu0 0.0
    %388 = vmatprep.subr.mxu0 0.0
    %389 = vmatpush1.msra.mxu0 0.0
    %390 = vmatprep.subr.mxu0 0.0
    %391 = vmatpush1.msra.mxu0 0.0
    %392 = vmatprep.subr.mxu0 0.0
    %393 = vmatpush1.msra.mxu0 0.0
    %394 = vmatprep.subr.mxu0 0.0
    %395 = vmatpush1.msra.mxu0 0.0
    %396 = vmatprep.subr.mxu0 0.0
    %397 = vmatpush1.msra.mxu0 0.0
    %398 = vmatprep.subr.mxu0 0.0
    %399 = vmatpush1.msra.mxu0 0.0
    %400 = vmatprep.subr.mxu0 0.0
    %401 = vmatpush1.msra.mxu0 0.0
    %402 = vmatprep.subr.mxu0 0.0
    %403 = vmatpush1.msra.mxu0 0.0
    %404 = vmatprep.subr.mxu0 0.0
    %405 = vmatpush1.msra.mxu0 0.0
    %406 = vmatprep.subr.mxu0 0.0
    %407 = vmatpush1.msra.mxu0 0.0
    %408 = vmatprep.subr.mxu0 0.0
    %409 = vmatpush1.msra.mxu0 0.0
    %410 = vmatprep.subr.mxu0 0.0
    %411 = vmatpush1.msra.mxu0 0.0
    %412 = vmatprep.subr.mxu0 0.0
    %413 = vmatpush1.msra.mxu0 0.0
    %414 = vmatprep.subr.mxu0 0.0
    %415 = vmatpush1.msra.mxu0 %v379
    %416 = vmatprep.subr.mxu0 0.0
    %417 = vmatpush2.msra.mxu0 0.0
    %418 = vmatprep.subr.mxu0 0.0
    %419 = vmatpush2.msra.mxu0 0.0
    %420 = vmatprep.subr.mxu0 0.0
    %421 = vmatpush2.msra.mxu0 0.0
    %422 = vmatprep.subr.mxu0 0.0
    %423 = vmatpush2.msra.mxu0 0.0
    %424 = vmatprep.subr.mxu0 0.0
    %425 = vmatpush2.msra.mxu0 0.0
    %426 = vmatprep.subr.mxu0 0.0
    %427 = vmatpush2.msra.mxu0 0.0
    %428 = vmatprep.subr.mxu0 0.0
    %429 = vmatpush2.msra.mxu0 0.0
    %430 = vmatprep.subr.mxu0 0.0
    %431 = vmatpush2.msra.mxu0 0.0
    %432 = vmatprep.subr.mxu0 0.0
    %433 = vmatpush2.msra.mxu0 0.0
    %434 = vmatprep.subr.mxu0 0.0
    %435 = vmatpush2.msra.mxu0 0.0
    %436 = vmatprep.subr.mxu0 0.0
    %437 = vmatpush2.msra.mxu0 0.0
    %438 = vmatprep.subr.mxu0 0.0
    %439 = vmatpush2.msra.mxu0 0.0
    %440 = vmatprep.subr.mxu0 0.0
    %441 = vmatpush2.msra.mxu0 0.0
    %442 = vmatprep.subr.mxu0 0.0
    %443 = vmatpush2.msra.mxu0 0.0
    %444 = vmatprep.subr.mxu0 0.0
    %445 = vmatpush2.msra.mxu0 0.0
    %446 = vmatprep.subr.mxu0 0.0
    %447 = vmatpush2.msra.mxu0 0.0
    %448 = vmatprep.mubr.f32.mxu0 0.0
    %449 = vmatmul.mubr.f32.gmra.mxu0 %v382
    %v450 = vpop.f32.mrf.mxu0
    %v451 = vadd.f32 0.0, %v450
    %v452 = vpop.f32.mrf.mxu0
    %453 = vdwg.mxu0
    %454 = vrot.lane.b32.xlu0 %v196, 64
    %v455 = vpop.permute.xlu0 %454
    %v458 = vsel %vm202, %v377, 0
    %460 = vmatprep.subr.mxu0 0.0
    %461 = vmatpush1.msra.mxu0 0.0
    %462 = vmatprep.subr.mxu0 0.0
    %463 = vmatpush1.msra.mxu0 0.0
    %464 = vmatprep.subr.mxu0 0.0
    %465 = vmatpush1.msra.mxu0 0.0
    %466 = vmatprep.subr.mxu0 0.0
    %467 = vmatpush1.msra.mxu0 0.0
    %468 = vmatprep.subr.mxu0 0.0
    %469 = vmatpush1.msra.mxu0 0.0
    %470 = vmatprep.subr.mxu0 0.0
    %471 = vmatpush1.msra.mxu0 0.0
    %472 = vmatprep.subr.mxu0 0.0
    %473 = vmatpush1.msra.mxu0 0.0
    %474 = vmatprep.subr.mxu0 0.0
    %475 = vmatpush1.msra.mxu0 0.0
    %476 = vmatprep.subr.mxu0 0.0
    %477 = vmatpush1.msra.mxu0 0.0
    %478 = vmatprep.subr.mxu0 0.0
    %479 = vmatpush1.msra.mxu0 0.0
    %480 = vmatprep.subr.mxu0 0.0
    %481 = vmatpush1.msra.mxu0 0.0
    %482 = vmatprep.subr.mxu0 0.0
    %483 = vmatpush1.msra.mxu0 0.0
    %484 = vmatprep.subr.mxu0 0.0
    %485 = vmatpush1.msra.mxu0 0.0
    %486 = vmatprep.subr.mxu0 0.0
    %487 = vmatpush1.msra.mxu0 0.0
    %488 = vmatprep.subr.mxu0 0.0
    %489 = vmatpush1.msra.mxu0 0.0
    %490 = vmatprep.subr.mxu0 0.0
    %491 = vmatpush1.msra.mxu0 %v455
    %492 = vmatprep.subr.mxu0 0.0
    %493 = vmatpush2.msra.mxu0 0.0
    %494 = vmatprep.subr.mxu0 0.0
    %495 = vmatpush2.msra.mxu0 0.0
    %496 = vmatprep.subr.mxu0 0.0
    %497 = vmatpush2.msra.mxu0 0.0
    %498 = vmatprep.subr.mxu0 0.0
    %499 = vmatpush2.msra.mxu0 0.0
    %500 = vmatprep.subr.mxu0 0.0
    %501 = vmatpush2.msra.mxu0 0.0
    %502 = vmatprep.subr.mxu0 0.0
    %503 = vmatpush2.msra.mxu0 0.0
    %504 = vmatprep.subr.mxu0 0.0
    %505 = vmatpush2.msra.mxu0 0.0
    %506 = vmatprep.subr.mxu0 0.0
    %507 = vmatpush2.msra.mxu0 0.0
    %508 = vmatprep.subr.mxu0 0.0
    %509 = vmatpush2.msra.mxu0 0.0
    %510 = vmatprep.subr.mxu0 0.0
    %511 = vmatpush2.msra.mxu0 0.0
    %512 = vmatprep.subr.mxu0 0.0
    %513 = vmatpush2.msra.mxu0 0.0
    %514 = vmatprep.subr.mxu0 0.0
    %515 = vmatpush2.msra.mxu0 0.0
    %516 = vmatprep.subr.mxu0 0.0
    %517 = vmatpush2.msra.mxu0 0.0
    %518 = vmatprep.subr.mxu0 0.0
    %519 = vmatpush2.msra.mxu0 0.0
    %520 = vmatprep.subr.mxu0 0.0
    %521 = vmatpush2.msra.mxu0 0.0
    %522 = vmatprep.subr.mxu0 0.0
    %523 = vmatpush2.msra.mxu0 0.0
    %524 = vmatprep.mubr.f32.mxu0 0.0
    %525 = vmatmul.mubr.f32.gmra.mxu0 %v458
    %v526 = vpop.f32.mrf.mxu0
    %v527 = vadd.f32 0.0, %v526
    %v528 = vpop.f32.mrf.mxu0
    %529 = vdwg.mxu0
    %530 = vrot.lane.b32.xlu0 %v191, 120
    %v531 = vpop.permute.xlu0 %530
    %532 = vrot.lane.b32.xlu0 %v191, 88
    %v533 = vpop.permute.xlu0 %532
    %v534 = vsel %vm202, %v531, 0
    %v536 = vsel %vm202, %v533, 0
    %538 = vmatprep.subr.mxu0 0.0
    %539 = vmatpush1.xpose.msra.mxu0 0.0
    %540 = vmatprep.subr.mxu0 0.0
    %541 = vmatpush1.xpose.msra.mxu0 0.0
    %542 = vmatprep.subr.mxu0 0.0
    %543 = vmatpush1.xpose.msra.mxu0 0.0
    %544 = vmatprep.subr.mxu0 0.0
    %545 = vmatpush1.xpose.msra.mxu0 0.0
    %546 = vmatprep.subr.mxu0 0.0
    %547 = vmatpush1.xpose.msra.mxu0 0.0
    %548 = vmatprep.subr.mxu0 0.0
    %549 = vmatpush1.xpose.msra.mxu0 0.0
    %550 = vmatprep.subr.mxu0 0.0
    %551 = vmatpush1.xpose.msra.mxu0 0.0
    %552 = vmatprep.subr.mxu0 0.0
    %553 = vmatpush1.xpose.msra.mxu0 0.0
    %554 = vmatprep.subr.mxu0 0.0
    %555 = vmatpush1.xpose.msra.mxu0 0.0
    %556 = vmatprep.subr.mxu0 0.0
    %557 = vmatpush1.xpose.msra.mxu0 0.0
    %558 = vmatprep.subr.mxu0 0.0
    %559 = vmatpush1.xpose.msra.mxu0 0.0
    %560 = vmatprep.subr.mxu0 0.0
    %561 = vmatpush1.xpose.msra.mxu0 0.0
    %562 = vmatprep.subr.mxu0 0.0
    %563 = vmatpush1.xpose.msra.mxu0 0.0
    %564 = vmatprep.subr.mxu0 0.0
    %565 = vmatpush1.xpose.msra.mxu0 0.0
    %566 = vmatprep.subr.mxu0 0.0
    %567 = vmatpush1.xpose.msra.mxu0 0.0
    %568 = vmatprep.subr.mxu0 0.0
    %569 = vmatpush1.xpose.msra.mxu0 %v536
    %570 = vmatprep.subr.mxu0 0.0
    %571 = vmatpush2.xpose.msra.mxu0 0.0
    %572 = vmatprep.subr.mxu0 0.0
    %573 = vmatpush2.xpose.msra.mxu0 0.0
    %574 = vmatprep.subr.mxu0 0.0
    %575 = vmatpush2.xpose.msra.mxu0 0.0
    %576 = vmatprep.subr.mxu0 0.0
    %577 = vmatpush2.xpose.msra.mxu0 0.0
    %578 = vmatprep.subr.mxu0 0.0
    %579 = vmatpush2.xpose.msra.mxu0 0.0
    %580 = vmatprep.subr.mxu0 0.0
    %581 = vmatpush2.xpose.msra.mxu0 0.0
    %582 = vmatprep.subr.mxu0 0.0
    %583 = vmatpush2.xpose.msra.mxu0 0.0
    %584 = vmatprep.subr.mxu0 0.0
    %585 = vmatpush2.xpose.msra.mxu0 0.0
    %586 = vmatprep.subr.mxu0 0.0
    %587 = vmatpush2.xpose.msra.mxu0 0.0
    %588 = vmatprep.subr.mxu0 0.0
    %589 = vmatpush2.xpose.msra.mxu0 0.0
    %590 = vmatprep.subr.mxu0 0.0
    %591 = vmatpush2.xpose.msra.mxu0 0.0
    %592 = vmatprep.subr.mxu0 0.0
    %593 = vmatpush2.xpose.msra.mxu0 0.0
    %594 = vmatprep.subr.mxu0 0.0
    %595 = vmatpush2.xpose.msra.mxu0 0.0
    %596 = vmatprep.subr.mxu0 0.0
    %597 = vmatpush2.xpose.msra.mxu0 0.0
    %598 = vmatprep.subr.mxu0 0.0
    %599 = vmatpush2.xpose.msra.mxu0 0.0
    %600 = vmatprep.subr.mxu0 0.0
    %601 = vmatpush2.xpose.msra.mxu0 0.0
    %602 = vmatprep.mubr.f32.mxu0 0.0
    %603 = vmatmul.mubr.f32.gmra.mxu0 %v534
    %v604 = vpop.f32.mrf.mxu0
    %v605 = vadd.f32 0.0, %v604
    %v606 = vpop.f32.mrf.mxu0
    %607 = vdwg.mxu0
    %608 = vrot.lane.b32.xlu0 %v196, 120
    %v609 = vpop.permute.xlu0 %608
    %610 = vrot.lane.b32.xlu0 %v196, 88
    %v611 = vpop.permute.xlu0 %610
    %v612 = vsel %vm202, %v609, 0
    %v614 = vsel %vm202, %v611, 0
    %616 = vmatprep.subr.mxu0 0.0
    %617 = vmatpush1.xpose.msra.mxu0 0.0
    %618 = vmatprep.subr.mxu0 0.0
    %619 = vmatpush1.xpose.msra.mxu0 0.0
    %620 = vmatprep.subr.mxu0 0.0
    %621 = vmatpush1.xpose.msra.mxu0 0.0
    %622 = vmatprep.subr.mxu0 0.0
    %623 = vmatpush1.xpose.msra.mxu0 0.0
    %624 = vmatprep.subr.mxu0 0.0
    %625 = vmatpush1.xpose.msra.mxu0 0.0
    %626 = vmatprep.subr.mxu0 0.0
    %627 = vmatpush1.xpose.msra.mxu0 0.0
    %628 = vmatprep.subr.mxu0 0.0
    %629 = vmatpush1.xpose.msra.mxu0 0.0
    %630 = vmatprep.subr.mxu0 0.0
    %631 = vmatpush1.xpose.msra.mxu0 0.0
    %632 = vmatprep.subr.mxu0 0.0
    %633 = vmatpush1.xpose.msra.mxu0 0.0
    %634 = vmatprep.subr.mxu0 0.0
    %635 = vmatpush1.xpose.msra.mxu0 0.0
    %636 = vmatprep.subr.mxu0 0.0
    %637 = vmatpush1.xpose.msra.mxu0 0.0
    %638 = vmatprep.subr.mxu0 0.0
    %639 = vmatpush1.xpose.msra.mxu0 0.0
    %640 = vmatprep.subr.mxu0 0.0
    %641 = vmatpush1.xpose.msra.mxu0 0.0
    %642 = vmatprep.subr.mxu0 0.0
    %643 = vmatpush1.xpose.msra.mxu0 0.0
    %644 = vmatprep.subr.mxu0 0.0
    %645 = vmatpush1.xpose.msra.mxu0 0.0
    %646 = vmatprep.subr.mxu0 0.0
    %647 = vmatpush1.xpose.msra.mxu0 %v614
    %648 = vmatprep.subr.mxu0 0.0
    %649 = vmatpush2.xpose.msra.mxu0 0.0
    %650 = vmatprep.subr.mxu0 0.0
    %651 = vmatpush2.xpose.msra.mxu0 0.0
    %652 = vmatprep.subr.mxu0 0.0
    %653 = vmatpush2.xpose.msra.mxu0 0.0
    %654 = vmatprep.subr.mxu0 0.0
    %655 = vmatpush2.xpose.msra.mxu0 0.0
    %656 = vmatprep.subr.mxu0 0.0
    %657 = vmatpush2.xpose.msra.mxu0 0.0
    %658 = vmatprep.subr.mxu0 0.0
    %659 = vmatpush2.xpose.msra.mxu0 0.0
    %660 = vmatprep.subr.mxu0 0.0
    %661 = vmatpush2.xpose.msra.mxu0 0.0
    %662 = vmatprep.subr.mxu0 0.0
    %663 = vmatpush2.xpose.msra.mxu0 0.0
    %664 = vmatprep.subr.mxu0 0.0
    %665 = vmatpush2.xpose.msra.mxu0 0.0
    %666 = vmatprep.subr.mxu0 0.0
    %667 = vmatpush2.xpose.msra.mxu0 0.0
    %668 = vmatprep.subr.mxu0 0.0
    %669 = vmatpush2.xpose.msra.mxu0 0.0
    %670 = vmatprep.subr.mxu0 0.0
    %671 = vmatpush2.xpose.msra.mxu0 0.0
    %672 = vmatprep.subr.mxu0 0.0
    %673 = vmatpush2.xpose.msra.mxu0 0.0
    %674 = vmatprep.subr.mxu0 0.0
    %675 = vmatpush2.xpose.msra.mxu0 0.0
    %676 = vmatprep.subr.mxu0 0.0
    %677 = vmatpush2.xpose.msra.mxu0 0.0
    %678 = vmatprep.subr.mxu0 0.0
    %679 = vmatpush2.xpose.msra.mxu0 0.0
    %680 = vmatprep.mubr.f32.mxu0 0.0
    %681 = vmatmul.mubr.f32.gmra.mxu0 %v612
    %v682 = vpop.f32.mrf.mxu0
    %v683 = vadd.f32 0.0, %v682
    %v684 = vpop.f32.mrf.mxu0
    %685 = vdwg.mxu0
    %v686 = vmul.f32 %v605, 0.35355338
    %v687 = vmul.f32 %v683, 0.35355338
    %v688 = vsel %vm202, %v686, -inf
    %689 = vmax.xlane.f32.xlu0 %v688
    %v690 = vpop.xlane.xlu0 %689
    %v691 = vsel %vm202, %v687, -inf
    %692 = vmax.xlane.f32.xlu0 %v691
    %v693 = vpop.xlane.xlu0 %692
    %v694 = vsub.f32 %v686, %v690
    %v695 = vsub.f32 %v687, %v693
    %v696 = vmul.f32 %v694, 1.442695
    %v697 = vpow.pop %v696
    %v698 = vmul.f32 %v695, 1.442695
    %v699 = vpow.pop %v698
    %v700 = vsel %vm202, %v697, 0.0
    %701 = vadd.xlane.f32.xlu0 %v700
    %v702 = vpop.xlane.xlu0 %701
    %v703 = vsel %vm202, %v699, 0.0
    %704 = vadd.xlane.f32.xlu0 %v703
    %v705 = vpop.xlane.xlu0 %704
    %v706 = vrcp.pop %v702
    %v707 = vrcp.pop %v705
    %v708 = vmul.f32 %v697, %v706
    %v709 = vmul.f32 %v699, %v707
    %710 = vrot.lane.b32.xlu0 %v191, 56
    %v711 = vpop.permute.xlu0 %710
    %v714 = vsel %vm202, %v708, 0
    %716 = vmatprep.subr.mxu0 0.0
    %717 = vmatpush1.msra.mxu0 0.0
    %718 = vmatprep.subr.mxu0 0.0
    %719 = vmatpush1.msra.mxu0 0.0
    %720 = vmatprep.subr.mxu0 0.0
    %721 = vmatpush1.msra.mxu0 0.0
    %722 = vmatprep.subr.mxu0 0.0
    %723 = vmatpush1.msra.mxu0 0.0
    %724 = vmatprep.subr.mxu0 0.0
    %725 = vmatpush1.msra.mxu0 0.0
    %726 = vmatprep.subr.mxu0 0.0
    %727 = vmatpush1.msra.mxu0 0.0
    %728 = vmatprep.subr.mxu0 0.0
    %729 = vmatpush1.msra.mxu0 0.0
    %730 = vmatprep.subr.mxu0 0.0
    %731 = vmatpush1.msra.mxu0 0.0
    %732 = vmatprep.subr.mxu0 0.0
    %733 = vmatpush1.msra.mxu0 0.0
    %734 = vmatprep.subr.mxu0 0.0
    %735 = vmatpush1.msra.mxu0 0.0
    %736 = vmatprep.subr.mxu0 0.0
    %737 = vmatpush1.msra.mxu0 0.0
    %738 = vmatprep.subr.mxu0 0.0
    %739 = vmatpush1.msra.mxu0 0.0
    %740 = vmatprep.subr.mxu0 0.0
    %741 = vmatpush1.msra.mxu0 0.0
    %742 = vmatprep.subr.mxu0 0.0
    %743 = vmatpush1.msra.mxu0 0.0
    %744 = vmatprep.subr.mxu0 0.0
    %745 = vmatpush1.msra.mxu0 0.0
    %746 = vmatprep.subr.mxu0 0.0
    %747 = vmatpush1.msra.mxu0 %v711
    %748 = vmatprep.subr.mxu0 0.0
    %749 = vmatpush2.msra.mxu0 0.0
    %750 = vmatprep.subr.mxu0 0.0
    %751 = vmatpush2.msra.mxu0 0.0
    %752 = vmatprep.subr.mxu0 0.0
    %753 = vmatpush2.msra.mxu0 0.0
    %754 = vmatprep.subr.mxu0 0.0
    %755 = vmatpush2.msra.mxu0 0.0
    %756 = vmatprep.subr.mxu0 0.0
    %757 = vmatpush2.msra.mxu0 0.0
    %758 = vmatprep.subr.mxu0 0.0
    %759 = vmatpush2.msra.mxu0 0.0
    %760 = vmatprep.subr.mxu0 0.0
    %761 = vmatpush2.msra.mxu0 0.0
    %762 = vmatprep.subr.mxu0 0.0
    %763 = vmatpush2.msra.mxu0 0.0
    %764 = vmatprep.subr.mxu0 0.0
    %765 = vmatpush2.msra.mxu0 0.0
    %766 = vmatprep.subr.mxu0 0.0
    %767 = vmatpush2.msra.mxu0 0.0
    %768 = vmatprep.subr.mxu0 0.0
    %769 = vmatpush2.msra.mxu0 0.0
    %770 = vmatprep.subr.mxu0 0.0
    %771 = vmatpush2.msra.mxu0 0.0
    %772 = vmatprep.subr.mxu0 0.0
    %773 = vmatpush2.msra.mxu0 0.0
    %774 = vmatprep.subr.mxu0 0.0
    %775 = vmatpush2.msra.mxu0 0.0
    %776 = vmatprep.subr.mxu0 0.0
    %777 = vmatpush2.msra.mxu0 0.0
    %778 = vmatprep.subr.mxu0 0.0
    %779 = vmatpush2.msra.mxu0 0.0
    %780 = vmatprep.mubr.f32.mxu0 0.0
    %781 = vmatmul.mubr.f32.gmra.mxu0 %v714
    %v782 = vpop.f32.mrf.mxu0
    %v783 = vadd.f32 0.0, %v782
    %v784 = vpop.f32.mrf.mxu0
    %785 = vdwg.mxu0
    %786 = vrot.lane.b32.xlu0 %v196, 56
    %v787 = vpop.permute.xlu0 %786
    %v790 = vsel %vm202, %v709, 0
    %792 = vmatprep.subr.mxu0 0.0
    %793 = vmatpush1.msra.mxu0 0.0
    %794 = vmatprep.subr.mxu0 0.0
    %795 = vmatpush1.msra.mxu0 0.0
    %796 = vmatprep.subr.mxu0 0.0
    %797 = vmatpush1.msra.mxu0 0.0
    %798 = vmatprep.subr.mxu0 0.0
    %799 = vmatpush1.msra.mxu0 0.0
    %800 = vmatprep.subr.mxu0 0.0
    %801 = vmatpush1.msra.mxu0 0.0
    %802 = vmatprep.subr.mxu0 0.0
    %803 = vmatpush1.msra.mxu0 0.0
    %804 = vmatprep.subr.mxu0 0.0
    %805 = vmatpush1.msra.mxu0 0.0
    %806 = vmatprep.subr.mxu0 0.0
    %807 = vmatpush1.msra.mxu0 0.0
    %808 = vmatprep.subr.mxu0 0.0
    %809 = vmatpush1.msra.mxu0 0.0
    %810 = vmatprep.subr.mxu0 0.0
    %811 = vmatpush1.msra.mxu0 0.0
    %812 = vmatprep.subr.mxu0 0.0
    %813 = vmatpush1.msra.mxu0 0.0
    %814 = vmatprep.subr.mxu0 0.0
    %815 = vmatpush1.msra.mxu0 0.0
    %816 = vmatprep.subr.mxu0 0.0
    %817 = vmatpush1.msra.mxu0 0.0
    %818 = vmatprep.subr.mxu0 0.0
    %819 = vmatpush1.msra.mxu0 0.0
    %820 = vmatprep.subr.mxu0 0.0
    %821 = vmatpush1.msra.mxu0 0.0
    %822 = vmatprep.subr.mxu0 0.0
    %823 = vmatpush1.msra.mxu0 %v787
    %824 = vmatprep.subr.mxu0 0.0
    %825 = vmatpush2.msra.mxu0 0.0
    %826 = vmatprep.subr.mxu0 0.0
    %827 = vmatpush2.msra.mxu0 0.0
    %828 = vmatprep.subr.mxu0 0.0
    %829 = vmatpush2.msra.mxu0 0.0
    %830 = vmatprep.subr.mxu0 0.0
    %831 = vmatpush2.msra.mxu0 0.0
    %832 = vmatprep.subr.mxu0 0.0
    %833 = vmatpush2.msra.mxu0 0.0
    %834 = vmatprep.subr.mxu0 0.0
    %835 = vmatpush2.msra.mxu0 0.0
    %836 = vmatprep.subr.mxu0 0.0
    %837 = vmatpush2.msra.mxu0 0.0
    %838 = vmatprep.subr.mxu0 0.0
    %839 = vmatpush2.msra.mxu0 0.0
    %840 = vmatprep.subr.mxu0 0.0
    %841 = vmatpush2.msra.mxu0 0.0
    %842 = vmatprep.subr.mxu0 0.0
    %843 = vmatpush2.msra.mxu0 0.0
    %844 = vmatprep.subr.mxu0 0.0
    %845 = vmatpush2.msra.mxu0 0.0
    %846 = vmatprep.subr.mxu0 0.0
    %847 = vmatpush2.msra.mxu0 0.0
    %848 = vmatprep.subr.mxu0 0.0
    %849 = vmatpush2.msra.mxu0 0.0
    %850 = vmatprep.subr.mxu0 0.0
    %851 = vmatpush2.msra.mxu0 0.0
    %852 = vmatprep.subr.mxu0 0.0
    %853 = vmatpush2.msra.mxu0 0.0
    %854 = vmatprep.subr.mxu0 0.0
    %855 = vmatpush2.msra.mxu0 0.0
    %856 = vmatprep.mubr.f32.mxu0 0.0
    %857 = vmatmul.mubr.f32.gmra.mxu0 %v790
    %v858 = vpop.f32.mrf.mxu0
    %v859 = vadd.f32 0.0, %v858
    %v860 = vpop.f32.mrf.mxu0
    %861 = vdwg.mxu0
    %862 = vrot.lane.b32.xlu0 %v191, 112
    %v863 = vpop.permute.xlu0 %862
    %864 = vrot.lane.b32.xlu0 %v191, 80
    %v865 = vpop.permute.xlu0 %864
    %v866 = vsel %vm202, %v863, 0
    %v868 = vsel %vm202, %v865, 0
    %870 = vmatprep.subr.mxu0 0.0
    %871 = vmatpush1.xpose.msra.mxu0 0.0
    %872 = vmatprep.subr.mxu0 0.0
    %873 = vmatpush1.xpose.msra.mxu0 0.0
    %874 = vmatprep.subr.mxu0 0.0
    %875 = vmatpush1.xpose.msra.mxu0 0.0
    %876 = vmatprep.subr.mxu0 0.0
    %877 = vmatpush1.xpose.msra.mxu0 0.0
    %878 = vmatprep.subr.mxu0 0.0
    %879 = vmatpush1.xpose.msra.mxu0 0.0
    %880 = vmatprep.subr.mxu0 0.0
    %881 = vmatpush1.xpose.msra.mxu0 0.0
    %882 = vmatprep.subr.mxu0 0.0
    %883 = vmatpush1.xpose.msra.mxu0 0.0
    %884 = vmatprep.subr.mxu0 0.0
    %885 = vmatpush1.xpose.msra.mxu0 0.0
    %886 = vmatprep.subr.mxu0 0.0
    %887 = vmatpush1.xpose.msra.mxu0 0.0
    %888 = vmatprep.subr.mxu0 0.0
    %889 = vmatpush1.xpose.msra.mxu0 0.0
    %890 = vmatprep.subr.mxu0 0.0
    %891 = vmatpush1.xpose.msra.mxu0 0.0
    %892 = vmatprep.subr.mxu0 0.0
    %893 = vmatpush1.xpose.msra.mxu0 0.0
    %894 = vmatprep.subr.mxu0 0.0
    %895 = vmatpush1.xpose.msra.mxu0 0.0
    %896 = vmatprep.subr.mxu0 0.0
    %897 = vmatpush1.xpose.msra.mxu0 0.0
    %898 = vmatprep.subr.mxu0 0.0
    %899 = vmatpush1.xpose.msra.mxu0 0.0
    %900 = vmatprep.subr.mxu0 0.0
    %901 = vmatpush1.xpose.msra.mxu0 %v868
    %902 = vmatprep.subr.mxu0 0.0
    %903 = vmatpush2.xpose.msra.mxu0 0.0
    %904 = vmatprep.subr.mxu0 0.0
    %905 = vmatpush2.xpose.msra.mxu0 0.0
    %906 = vmatprep.subr.mxu0 0.0
    %907 = vmatpush2.xpose.msra.mxu0 0.0
    %908 = vmatprep.subr.mxu0 0.0
    %909 = vmatpush2.xpose.msra.mxu0 0.0
    %910 = vmatprep.subr.mxu0 0.0
    %911 = vmatpush2.xpose.msra.mxu0 0.0
    %912 = vmatprep.subr.mxu0 0.0
    %913 = vmatpush2.xpose.msra.mxu0 0.0
    %914 = vmatprep.subr.mxu0 0.0
    %915 = vmatpush2.xpose.msra.mxu0 0.0
    %916 = vmatprep.subr.mxu0 0.0
    %917 = vmatpush2.xpose.msra.mxu0 0.0
    %918 = vmatprep.subr.mxu0 0.0
    %919 = vmatpush2.xpose.msra.mxu0 0.0
    %920 = vmatprep.subr.mxu0 0.0
    %921 = vmatpush2.xpose.msra.mxu0 0.0
    %922 = vmatprep.subr.mxu0 0.0
    %923 = vmatpush2.xpose.msra.mxu0 0.0
    %924 = vmatprep.subr.mxu0 0.0
    %925 = vmatpush2.xpose.msra.mxu0 0.0
    %926 = vmatprep.subr.mxu0 0.0
    %927 = vmatpush2.xpose.msra.mxu0 0.0
    %928 = vmatprep.subr.mxu0 0.0
    %929 = vmatpush2.xpose.msra.mxu0 0.0
    %930 = vmatprep.subr.mxu0 0.0
    %931 = vmatpush2.xpose.msra.mxu0 0.0
    %932 = vmatprep.subr.mxu0 0.0
    %933 = vmatpush2.xpose.msra.mxu0 0.0
    %934 = vmatprep.mubr.f32.mxu0 0.0
    %935 = vmatmul.mubr.f32.gmra.mxu0 %v866
    %v936 = vpop.f32.mrf.mxu0
    %v937 = vadd.f32 0.0, %v936
    %v938 = vpop.f32.mrf.mxu0
    %939 = vdwg.mxu0
    %940 = vrot.lane.b32.xlu0 %v196, 112
    %v941 = vpop.permute.xlu0 %940
    %942 = vrot.lane.b32.xlu0 %v196, 80
    %v943 = vpop.permute.xlu0 %942
    %v944 = vsel %vm202, %v941, 0
    %v946 = vsel %vm202, %v943, 0
    %948 = vmatprep.subr.mxu0 0.0
    %949 = vmatpush1.xpose.msra.mxu0 0.0
    %950 = vmatprep.subr.mxu0 0.0
    %951 = vmatpush1.xpose.msra.mxu0 0.0
    %952 = vmatprep.subr.mxu0 0.0
    %953 = vmatpush1.xpose.msra.mxu0 0.0
    %954 = vmatprep.subr.mxu0 0.0
    %955 = vmatpush1.xpose.msra.mxu0 0.0
    %956 = vmatprep.subr.mxu0 0.0
    %957 = vmatpush1.xpose.msra.mxu0 0.0
    %958 = vmatprep.subr.mxu0 0.0
    %959 = vmatpush1.xpose.msra.mxu0 0.0
    %960 = vmatprep.subr.mxu0 0.0
    %961 = vmatpush1.xpose.msra.mxu0 0.0
    %962 = vmatprep.subr.mxu0 0.0
    %963 = vmatpush1.xpose.msra.mxu0 0.0
    %964 = vmatprep.subr.mxu0 0.0
    %965 = vmatpush1.xpose.msra.mxu0 0.0
    %966 = vmatprep.subr.mxu0 0.0
    %967 = vmatpush1.xpose.msra.mxu0 0.0
    %968 = vmatprep.subr.mxu0 0.0
    %969 = vmatpush1.xpose.msra.mxu0 0.0
    %970 = vmatprep.subr.mxu0 0.0
    %971 = vmatpush1.xpose.msra.mxu0 0.0
    %972 = vmatprep.subr.mxu0 0.0
    %973 = vmatpush1.xpose.msra.mxu0 0.0
    %974 = vmatprep.subr.mxu0 0.0
    %975 = vmatpush1.xpose.msra.mxu0 0.0
    %976 = vmatprep.subr.mxu0 0.0
    %977 = vmatpush1.xpose.msra.mxu0 0.0
    %978 = vmatprep.subr.mxu0 0.0
    %979 = vmatpush1.xpose.msra.mxu0 %v946
    %980 = vmatprep.subr.mxu0 0.0
    %981 = vmatpush2.xpose.msra.mxu0 0.0
    %982 = vmatprep.subr.mxu0 0.0
    %983 = vmatpush2.xpose.msra.mxu0 0.0
    %984 = vmatprep.subr.mxu0 0.0
    %985 = vmatpush2.xpose.msra.mxu0 0.0
    %986 = vmatprep.subr.mxu0 0.0
    %987 = vmatpush2.xpose.msra.mxu0 0.0
    %988 = vmatprep.subr.mxu0 0.0
    %989 = vmatpush2.xpose.msra.mxu0 0.0
    %990 = vmatprep.subr.mxu0 0.0
    %991 = vmatpush2.xpose.msra.mxu0 0.0
    %992 = vmatprep.subr.mxu0 0.0
    %993 = vmatpush2.xpose.msra.mxu0 0.0
    %994 = vmatprep.subr.mxu0 0.0
    %995 = vmatpush2.xpose.msra.mxu0 0.0
    %996 = vmatprep.subr.mxu0 0.0
    %997 = vmatpush2.xpose.msra.mxu0 0.0
    %998 = vmatprep.subr.mxu0 0.0
    %999 = vmatpush2.xpose.msra.mxu0 0.0
    %1000 = vmatprep.subr.mxu0 0.0
    %1001 = vmatpush2.xpose.msra.mxu0 0.0
    %1002 = vmatprep.subr.mxu0 0.0
    %1003 = vmatpush2.xpose.msra.mxu0 0.0
    %1004 = vmatprep.subr.mxu0 0.0
    %1005 = vmatpush2.xpose.msra.mxu0 0.0
    %1006 = vmatprep.subr.mxu0 0.0
    %1007 = vmatpush2.xpose.msra.mxu0 0.0
    %1008 = vmatprep.subr.mxu0 0.0
    %1009 = vmatpush2.xpose.msra.mxu0 0.0
    %1010 = vmatprep.subr.mxu0 0.0
    %1011 = vmatpush2.xpose.msra.mxu0 0.0
    %1012 = vmatprep.mubr.f32.mxu0 0.0
    %1013 = vmatmul.mubr.f32.gmra.mxu0 %v944
    %v1014 = vpop.f32.mrf.mxu0
    %v1015 = vadd.f32 0.0, %v1014
    %v1016 = vpop.f32.mrf.mxu0
    %1017 = vdwg.mxu0
    %v1018 = vmul.f32 %v937, 0.35355338
    %v1019 = vmul.f32 %v1015, 0.35355338
    %v1020 = vsel %vm202, %v1018, -inf
    %1021 = vmax.xlane.f32.xlu0 %v1020
    %v1022 = vpop.xlane.xlu0 %1021
    %v1023 = vsel %vm202, %v1019, -inf
    %1024 = vmax.xlane.f32.xlu0 %v1023
    %v1025 = vpop.xlane.xlu0 %1024
    %v1026 = vsub.f32 %v1018, %v1022
    %v1027 = vsub.f32 %v1019, %v1025
    %v1028 = vmul.f32 %v1026, 1.442695
    %v1029 = vpow.pop %v1028
    %v1030 = vmul.f32 %v1027, 1.442695
    %v1031 = vpow.pop %v1030
    %v1032 = vsel %vm202, %v1029, 0.0
    %1033 = vadd.xlane.f32.xlu0 %v1032
    %v1034 = vpop.xlane.xlu0 %1033
    %v1035 = vsel %vm202, %v1031, 0.0
    %1036 = vadd.xlane.f32.xlu0 %v1035
    %v1037 = vpop.xlane.xlu0 %1036
    %v1038 = vrcp.pop %v1034
    %v1039 = vrcp.pop %v1037
    %v1040 = vmul.f32 %v1029, %v1038
    %v1041 = vmul.f32 %v1031, %v1039
    %1042 = vrot.lane.b32.xlu0 %v191, 48
    %v1043 = vpop.permute.xlu0 %1042
    %v1046 = vsel %vm202, %v1040, 0
    %1048 = vmatprep.subr.mxu0 0.0
    %1049 = vmatpush1.msra.mxu0 0.0
    %1050 = vmatprep.subr.mxu0 0.0
    %1051 = vmatpush1.msra.mxu0 0.0
    %1052 = vmatprep.subr.mxu0 0.0
    %1053 = vmatpush1.msra.mxu0 0.0
    %1054 = vmatprep.subr.mxu0 0.0
    %1055 = vmatpush1.msra.mxu0 0.0
    %1056 = vmatprep.subr.mxu0 0.0
    %1057 = vmatpush1.msra.mxu0 0.0
    %1058 = vmatprep.subr.mxu0 0.0
    %1059 = vmatpush1.msra.mxu0 0.0
    %1060 = vmatprep.subr.mxu0 0.0
    %1061 = vmatpush1.msra.mxu0 0.0
    %1062 = vmatprep.subr.mxu0 0.0
    %1063 = vmatpush1.msra.mxu0 0.0
    %1064 = vmatprep.subr.mxu0 0.0
    %1065 = vmatpush1.msra.mxu0 0.0
    %1066 = vmatprep.subr.mxu0 0.0
    %1067 = vmatpush1.msra.mxu0 0.0
    %1068 = vmatprep.subr.mxu0 0.0
    %1069 = vmatpush1.msra.mxu0 0.0
    %1070 = vmatprep.subr.mxu0 0.0
    %1071 = vmatpush1.msra.mxu0 0.0
    %1072 = vmatprep.subr.mxu0 0.0
    %1073 = vmatpush1.msra.mxu0 0.0
    %1074 = vmatprep.subr.mxu0 0.0
    %1075 = vmatpush1.msra.mxu0 0.0
    %1076 = vmatprep.subr.mxu0 0.0
    %1077 = vmatpush1.msra.mxu0 0.0
    %1078 = vmatprep.subr.mxu0 0.0
    %1079 = vmatpush1.msra.mxu0 %v1043
    %1080 = vmatprep.subr.mxu0 0.0
    %1081 = vmatpush2.msra.mxu0 0.0
    %1082 = vmatprep.subr.mxu0 0.0
    %1083 = vmatpush2.msra.mxu0 0.0
    %1084 = vmatprep.subr.mxu0 0.0
    %1085 = vmatpush2.msra.mxu0 0.0
    %1086 = vmatprep.subr.mxu0 0.0
    %1087 = vmatpush2.msra.mxu0 0.0
    %1088 = vmatprep.subr.mxu0 0.0
    %1089 = vmatpush2.msra.mxu0 0.0
    %1090 = vmatprep.subr.mxu0 0.0
    %1091 = vmatpush2.msra.mxu0 0.0
    %1092 = vmatprep.subr.mxu0 0.0
    %1093 = vmatpush2.msra.mxu0 0.0
    %1094 = vmatprep.subr.mxu0 0.0
    %1095 = vmatpush2.msra.mxu0 0.0
    %1096 = vmatprep.subr.mxu0 0.0
    %1097 = vmatpush2.msra.mxu0 0.0
    %1098 = vmatprep.subr.mxu0 0.0
    %1099 = vmatpush2.msra.mxu0 0.0
    %1100 = vmatprep.subr.mxu0 0.0
    %1101 = vmatpush2.msra.mxu0 0.0
    %1102 = vmatprep.subr.mxu0 0.0
    %1103 = vmatpush2.msra.mxu0 0.0
    %1104 = vmatprep.subr.mxu0 0.0
    %1105 = vmatpush2.msra.mxu0 0.0
    %1106 = vmatprep.subr.mxu0 0.0
    %1107 = vmatpush2.msra.mxu0 0.0
    %1108 = vmatprep.subr.mxu0 0.0
    %1109 = vmatpush2.msra.mxu0 0.0
    %1110 = vmatprep.subr.mxu0 0.0
    %1111 = vmatpush2.msra.mxu0 0.0
    %1112 = vmatprep.mubr.f32.mxu0 0.0
    %1113 = vmatmul.mubr.f32.gmra.mxu0 %v1046
    %v1114 = vpop.f32.mrf.mxu0
    %v1115 = vadd.f32 0.0, %v1114
    %v1116 = vpop.f32.mrf.mxu0
    %1117 = vdwg.mxu0
    %1118 = vrot.lane.b32.xlu0 %v196, 48
    %v1119 = vpop.permute.xlu0 %1118
    %v1122 = vsel %vm202, %v1041, 0
    %1124 = vmatprep.subr.mxu0 0.0
    %1125 = vmatpush1.msra.mxu0 0.0
    %1126 = vmatprep.subr.mxu0 0.0
    %1127 = vmatpush1.msra.mxu0 0.0
    %1128 = vmatprep.subr.mxu0 0.0
    %1129 = vmatpush1.msra.mxu0 0.0
    %1130 = vmatprep.subr.mxu0 0.0
    %1131 = vmatpush1.msra.mxu0 0.0
    %1132 = vmatprep.subr.mxu0 0.0
    %1133 = vmatpush1.msra.mxu0 0.0
    %1134 = vmatprep.subr.mxu0 0.0
    %1135 = vmatpush1.msra.mxu0 0.0
    %1136 = vmatprep.subr.mxu0 0.0
    %1137 = vmatpush1.msra.mxu0 0.0
    %1138 = vmatprep.subr.mxu0 0.0
    %1139 = vmatpush1.msra.mxu0 0.0
    %1140 = vmatprep.subr.mxu0 0.0
    %1141 = vmatpush1.msra.mxu0 0.0
    %1142 = vmatprep.subr.mxu0 0.0
    %1143 = vmatpush1.msra.mxu0 0.0
    %1144 = vmatprep.subr.mxu0 0.0
    %1145 = vmatpush1.msra.mxu0 0.0
    %1146 = vmatprep.subr.mxu0 0.0
    %1147 = vmatpush1.msra.mxu0 0.0
    %1148 = vmatprep.subr.mxu0 0.0
    %1149 = vmatpush1.msra.mxu0 0.0
    %1150 = vmatprep.subr.mxu0 0.0
    %1151 = vmatpush1.msra.mxu0 0.0
    %1152 = vmatprep.subr.mxu0 0.0
    %1153 = vmatpush1.msra.mxu0 0.0
    %1154 = vmatprep.subr.mxu0 0.0
    %1155 = vmatpush1.msra.mxu0 %v1119
    %1156 = vmatprep.subr.mxu0 0.0
    %1157 = vmatpush2.msra.mxu0 0.0
    %1158 = vmatprep.subr.mxu0 0.0
    %1159 = vmatpush2.msra.mxu0 0.0
    %1160 = vmatprep.subr.mxu0 0.0
    %1161 = vmatpush2.msra.mxu0 0.0
    %1162 = vmatprep.subr.mxu0 0.0
    %1163 = vmatpush2.msra.mxu0 0.0
    %1164 = vmatprep.subr.mxu0 0.0
    %1165 = vmatpush2.msra.mxu0 0.0
    %1166 = vmatprep.subr.mxu0 0.0
    %1167 = vmatpush2.msra.mxu0 0.0
    %1168 = vmatprep.subr.mxu0 0.0
    %1169 = vmatpush2.msra.mxu0 0.0
    %1170 = vmatprep.subr.mxu0 0.0
    %1171 = vmatpush2.msra.mxu0 0.0
    %1172 = vmatprep.subr.mxu0 0.0
    %1173 = vmatpush2.msra.mxu0 0.0
    %1174 = vmatprep.subr.mxu0 0.0
    %1175 = vmatpush2.msra.mxu0 0.0
    %1176 = vmatprep.subr.mxu0 0.0
    %1177 = vmatpush2.msra.mxu0 0.0
    %1178 = vmatprep.subr.mxu0 0.0
    %1179 = vmatpush2.msra.mxu0 0.0
    %1180 = vmatprep.subr.mxu0 0.0
    %1181 = vmatpush2.msra.mxu0 0.0
    %1182 = vmatprep.subr.mxu0 0.0
    %1183 = vmatpush2.msra.mxu0 0.0
    %1184 = vmatprep.subr.mxu0 0.0
    %1185 = vmatpush2.msra.mxu0 0.0
    %1186 = vmatprep.subr.mxu0 0.0
    %1187 = vmatpush2.msra.mxu0 0.0
    %1188 = vmatprep.mubr.f32.mxu0 0.0
    %1189 = vmatmul.mubr.f32.gmra.mxu0 %v1122
    %v1190 = vpop.f32.mrf.mxu0
    %v1191 = vadd.f32 0.0, %v1190
    %v1192 = vpop.f32.mrf.mxu0
    %1193 = vdwg.mxu0
    %1194 = vrot.lane.b32.xlu0 %v191, 104
    %v1195 = vpop.permute.xlu0 %1194
    %1196 = vrot.lane.b32.xlu0 %v191, 72
    %v1197 = vpop.permute.xlu0 %1196
    %v1198 = vsel %vm202, %v1195, 0
    %v1200 = vsel %vm202, %v1197, 0
    %1202 = vmatprep.subr.mxu0 0.0
    %1203 = vmatpush1.xpose.msra.mxu0 0.0
    %1204 = vmatprep.subr.mxu0 0.0
    %1205 = vmatpush1.xpose.msra.mxu0 0.0
    %1206 = vmatprep.subr.mxu0 0.0
    %1207 = vmatpush1.xpose.msra.mxu0 0.0
    %1208 = vmatprep.subr.mxu0 0.0
    %1209 = vmatpush1.xpose.msra.mxu0 0.0
    %1210 = vmatprep.subr.mxu0 0.0
    %1211 = vmatpush1.xpose.msra.mxu0 0.0
    %1212 = vmatprep.subr.mxu0 0.0
    %1213 = vmatpush1.xpose.msra.mxu0 0.0
    %1214 = vmatprep.subr.mxu0 0.0
    %1215 = vmatpush1.xpose.msra.mxu0 0.0
    %1216 = vmatprep.subr.mxu0 0.0
    %1217 = vmatpush1.xpose.msra.mxu0 0.0
    %1218 = vmatprep.subr.mxu0 0.0
    %1219 = vmatpush1.xpose.msra.mxu0 0.0
    %1220 = vmatprep.subr.mxu0 0.0
    %1221 = vmatpush1.xpose.msra.mxu0 0.0
    %1222 = vmatprep.subr.mxu0 0.0
    %1223 = vmatpush1.xpose.msra.mxu0 0.0
    %1224 = vmatprep.subr.mxu0 0.0
    %1225 = vmatpush1.xpose.msra.mxu0 0.0
    %1226 = vmatprep.subr.mxu0 0.0
    %1227 = vmatpush1.xpose.msra.mxu0 0.0
    %1228 = vmatprep.subr.mxu0 0.0
    %1229 = vmatpush1.xpose.msra.mxu0 0.0
    %1230 = vmatprep.subr.mxu0 0.0
    %1231 = vmatpush1.xpose.msra.mxu0 0.0
    %1232 = vmatprep.subr.mxu0 0.0
    %1233 = vmatpush1.xpose.msra.mxu0 %v1200
    %1234 = vmatprep.subr.mxu0 0.0
    %1235 = vmatpush2.xpose.msra.mxu0 0.0
    %1236 = vmatprep.subr.mxu0 0.0
    %1237 = vmatpush2.xpose.msra.mxu0 0.0
    %1238 = vmatprep.subr.mxu0 0.0
    %1239 = vmatpush2.xpose.msra.mxu0 0.0
    %1240 = vmatprep.subr.mxu0 0.0
    %1241 = vmatpush2.xpose.msra.mxu0 0.0
    %1242 = vmatprep.subr.mxu0 0.0
    %1243 = vmatpush2.xpose.msra.mxu0 0.0
    %1244 = vmatprep.subr.mxu0 0.0
    %1245 = vmatpush2.xpose.msra.mxu0 0.0
    %1246 = vmatprep.subr.mxu0 0.0
    %1247 = vmatpush2.xpose.msra.mxu0 0.0
    %1248 = vmatprep.subr.mxu0 0.0
    %1249 = vmatpush2.xpose.msra.mxu0 0.0
    %1250 = vmatprep.subr.mxu0 0.0
    %1251 = vmatpush2.xpose.msra.mxu0 0.0
    %1252 = vmatprep.subr.mxu0 0.0
    %1253 = vmatpush2.xpose.msra.mxu0 0.0
    %1254 = vmatprep.subr.mxu0 0.0
    %1255 = vmatpush2.xpose.msra.mxu0 0.0
    %1256 = vmatprep.subr.mxu0 0.0
    %1257 = vmatpush2.xpose.msra.mxu0 0.0
    %1258 = vmatprep.subr.mxu0 0.0
    %1259 = vmatpush2.xpose.msra.mxu0 0.0
    %1260 = vmatprep.subr.mxu0 0.0
    %1261 = vmatpush2.xpose.msra.mxu0 0.0
    %1262 = vmatprep.subr.mxu0 0.0
    %1263 = vmatpush2.xpose.msra.mxu0 0.0
    %1264 = vmatprep.subr.mxu0 0.0
    %1265 = vmatpush2.xpose.msra.mxu0 0.0
    %1266 = vmatprep.mubr.f32.mxu0 0.0
    %1267 = vmatmul.mubr.f32.gmra.mxu0 %v1198
    %v1268 = vpop.f32.mrf.mxu0
    %v1269 = vadd.f32 0.0, %v1268
    %v1270 = vpop.f32.mrf.mxu0
    %1271 = vdwg.mxu0
    %1272 = vrot.lane.b32.xlu0 %v196, 104
    %v1273 = vpop.permute.xlu0 %1272
    %1274 = vrot.lane.b32.xlu0 %v196, 72
    %v1275 = vpop.permute.xlu0 %1274
    %v1276 = vsel %vm202, %v1273, 0
    %v1278 = vsel %vm202, %v1275, 0
    %1280 = vmatprep.subr.mxu0 0.0
    %1281 = vmatpush1.xpose.msra.mxu0 0.0
    %1282 = vmatprep.subr.mxu0 0.0
    %1283 = vmatpush1.xpose.msra.mxu0 0.0
    %1284 = vmatprep.subr.mxu0 0.0
    %1285 = vmatpush1.xpose.msra.mxu0 0.0
    %1286 = vmatprep.subr.mxu0 0.0
    %1287 = vmatpush1.xpose.msra.mxu0 0.0
    %1288 = vmatprep.subr.mxu0 0.0
    %1289 = vmatpush1.xpose.msra.mxu0 0.0
    %1290 = vmatprep.subr.mxu0 0.0
    %1291 = vmatpush1.xpose.msra.mxu0 0.0
    %1292 = vmatprep.subr.mxu0 0.0
    %1293 = vmatpush1.xpose.msra.mxu0 0.0
    %1294 = vmatprep.subr.mxu0 0.0
    %1295 = vmatpush1.xpose.msra.mxu0 0.0
    %1296 = vmatprep.subr.mxu0 0.0
    %1297 = vmatpush1.xpose.msra.mxu0 0.0
    %1298 = vmatprep.subr.mxu0 0.0
    %1299 = vmatpush1.xpose.msra.mxu0 0.0
    %1300 = vmatprep.subr.mxu0 0.0
    %1301 = vmatpush1.xpose.msra.mxu0 0.0
    %1302 = vmatprep.subr.mxu0 0.0
    %1303 = vmatpush1.xpose.msra.mxu0 0.0
    %1304 = vmatprep.subr.mxu0 0.0
    %1305 = vmatpush1.xpose.msra.mxu0 0.0
    %1306 = vmatprep.subr.mxu0 0.0
    %1307 = vmatpush1.xpose.msra.mxu0 0.0
    %1308 = vmatprep.subr.mxu0 0.0
    %1309 = vmatpush1.xpose.msra.mxu0 0.0
    %1310 = vmatprep.subr.mxu0 0.0
    %1311 = vmatpush1.xpose.msra.mxu0 %v1278
    %1312 = vmatprep.subr.mxu0 0.0
    %1313 = vmatpush2.xpose.msra.mxu0 0.0
    %1314 = vmatprep.subr.mxu0 0.0
    %1315 = vmatpush2.xpose.msra.mxu0 0.0
    %1316 = vmatprep.subr.mxu0 0.0
    %1317 = vmatpush2.xpose.msra.mxu0 0.0
    %1318 = vmatprep.subr.mxu0 0.0
    %1319 = vmatpush2.xpose.msra.mxu0 0.0
    %1320 = vmatprep.subr.mxu0 0.0
    %1321 = vmatpush2.xpose.msra.mxu0 0.0
    %1322 = vmatprep.subr.mxu0 0.0
    %1323 = vmatpush2.xpose.msra.mxu0 0.0
    %1324 = vmatprep.subr.mxu0 0.0
    %1325 = vmatpush2.xpose.msra.mxu0 0.0
    %1326 = vmatprep.subr.mxu0 0.0
    %1327 = vmatpush2.xpose.msra.mxu0 0.0
    %1328 = vmatprep.subr.mxu0 0.0
    %1329 = vmatpush2.xpose.msra.mxu0 0.0
    %1330 = vmatprep.subr.mxu0 0.0
    %1331 = vmatpush2.xpose.msra.mxu0 0.0
    %1332 = vmatprep.subr.mxu0 0.0
    %1333 = vmatpush2.xpose.msra.mxu0 0.0
    %1334 = vmatprep.subr.mxu0 0.0
    %1335 = vmatpush2.xpose.msra.mxu0 0.0
    %1336 = vmatprep.subr.mxu0 0.0
    %1337 = vmatpush2.xpose.msra.mxu0 0.0
    %1338 = vmatprep.subr.mxu0 0.0
    %1339 = vmatpush2.xpose.msra.mxu0 0.0
    %1340 = vmatprep.subr.mxu0 0.0
    %1341 = vmatpush2.xpose.msra.mxu0 0.0
    %1342 = vmatprep.subr.mxu0 0.0
    %1343 = vmatpush2.xpose.msra.mxu0 0.0
    %1344 = vmatprep.mubr.f32.mxu0 0.0
    %1345 = vmatmul.mubr.f32.gmra.mxu0 %v1276
    %v1346 = vpop.f32.mrf.mxu0
    %v1347 = vadd.f32 0.0, %v1346
    %v1348 = vpop.f32.mrf.mxu0
    %1349 = vdwg.mxu0
    %v1350 = vmul.f32 %v1269, 0.35355338
    %v1351 = vmul.f32 %v1347, 0.35355338
    %v1352 = vsel %vm202, %v1350, -inf
    %1353 = vmax.xlane.f32.xlu0 %v1352
    %v1354 = vpop.xlane.xlu0 %1353
    %v1355 = vsel %vm202, %v1351, -inf
    %1356 = vmax.xlane.f32.xlu0 %v1355
    %v1357 = vpop.xlane.xlu0 %1356
    %v1358 = vsub.f32 %v1350, %v1354
    %v1359 = vsub.f32 %v1351, %v1357
    %v1360 = vmul.f32 %v1358, 1.442695
    %v1361 = vpow.pop %v1360
    %v1362 = vmul.f32 %v1359, 1.442695
    %v1363 = vpow.pop %v1362
    %v1364 = vsel %vm202, %v1361, 0.0
    %1365 = vadd.xlane.f32.xlu0 %v1364
    %v1366 = vpop.xlane.xlu0 %1365
    %v1367 = vsel %vm202, %v1363, 0.0
    %1368 = vadd.xlane.f32.xlu0 %v1367
    %v1369 = vpop.xlane.xlu0 %1368
    %v1370 = vrcp.pop %v1366
    %v1371 = vrcp.pop %v1369
    %v1372 = vmul.f32 %v1361, %v1370
    %v1373 = vmul.f32 %v1363, %v1371
    %1374 = vrot.lane.b32.xlu0 %v191, 40
    %v1375 = vpop.permute.xlu0 %1374
    %v1378 = vsel %vm202, %v1372, 0
    %1380 = vmatprep.subr.mxu0 0.0
    %1381 = vmatpush1.msra.mxu0 0.0
    %1382 = vmatprep.subr.mxu0 0.0
    %1383 = vmatpush1.msra.mxu0 0.0
    %1384 = vmatprep.subr.mxu0 0.0
    %1385 = vmatpush1.msra.mxu0 0.0
    %1386 = vmatprep.subr.mxu0 0.0
    %1387 = vmatpush1.msra.mxu0 0.0
    %1388 = vmatprep.subr.mxu0 0.0
    %1389 = vmatpush1.msra.mxu0 0.0
    %1390 = vmatprep.subr.mxu0 0.0
    %1391 = vmatpush1.msra.mxu0 0.0
    %1392 = vmatprep.subr.mxu0 0.0
    %1393 = vmatpush1.msra.mxu0 0.0
    %1394 = vmatprep.subr.mxu0 0.0
    %1395 = vmatpush1.msra.mxu0 0.0
    %1396 = vmatprep.subr.mxu0 0.0
    %1397 = vmatpush1.msra.mxu0 0.0
    %1398 = vmatprep.subr.mxu0 0.0
    %1399 = vmatpush1.msra.mxu0 0.0
    %1400 = vmatprep.subr.mxu0 0.0
    %1401 = vmatpush1.msra.mxu0 0.0
    %1402 = vmatprep.subr.mxu0 0.0
    %1403 = vmatpush1.msra.mxu0 0.0
    %1404 = vmatprep.subr.mxu0 0.0
    %1405 = vmatpush1.msra.mxu0 0.0
    %1406 = vmatprep.subr.mxu0 0.0
    %1407 = vmatpush1.msra.mxu0 0.0
    %1408 = vmatprep.subr.mxu0 0.0
    %1409 = vmatpush1.msra.mxu0 0.0
    %1410 = vmatprep.subr.mxu0 0.0
    %1411 = vmatpush1.msra.mxu0 %v1375
    %1412 = vmatprep.subr.mxu0 0.0
    %1413 = vmatpush2.msra.mxu0 0.0
    %1414 = vmatprep.subr.mxu0 0.0
    %1415 = vmatpush2.msra.mxu0 0.0
    %1416 = vmatprep.subr.mxu0 0.0
    %1417 = vmatpush2.msra.mxu0 0.0
    %1418 = vmatprep.subr.mxu0 0.0
    %1419 = vmatpush2.msra.mxu0 0.0
    %1420 = vmatprep.subr.mxu0 0.0
    %1421 = vmatpush2.msra.mxu0 0.0
    %1422 = vmatprep.subr.mxu0 0.0
    %1423 = vmatpush2.msra.mxu0 0.0
    %1424 = vmatprep.subr.mxu0 0.0
    %1425 = vmatpush2.msra.mxu0 0.0
    %1426 = vmatprep.subr.mxu0 0.0
    %1427 = vmatpush2.msra.mxu0 0.0
    %1428 = vmatprep.subr.mxu0 0.0
    %1429 = vmatpush2.msra.mxu0 0.0
    %1430 = vmatprep.subr.mxu0 0.0
    %1431 = vmatpush2.msra.mxu0 0.0
    %1432 = vmatprep.subr.mxu0 0.0
    %1433 = vmatpush2.msra.mxu0 0.0
    %1434 = vmatprep.subr.mxu0 0.0
    %1435 = vmatpush2.msra.mxu0 0.0
    %1436 = vmatprep.subr.mxu0 0.0
    %1437 = vmatpush2.msra.mxu0 0.0
    %1438 = vmatprep.subr.mxu0 0.0
    %1439 = vmatpush2.msra.mxu0 0.0
    %1440 = vmatprep.subr.mxu0 0.0
    %1441 = vmatpush2.msra.mxu0 0.0
    %1442 = vmatprep.subr.mxu0 0.0
    %1443 = vmatpush2.msra.mxu0 0.0
    %1444 = vmatprep.mubr.f32.mxu0 0.0
    %1445 = vmatmul.mubr.f32.gmra.mxu0 %v1378
    %v1446 = vpop.f32.mrf.mxu0
    %v1447 = vadd.f32 0.0, %v1446
    %v1448 = vpop.f32.mrf.mxu0
    %1449 = vdwg.mxu0
    %1450 = vrot.lane.b32.xlu0 %v196, 40
    %v1451 = vpop.permute.xlu0 %1450
    %v1454 = vsel %vm202, %v1373, 0
    %1456 = vmatprep.subr.mxu0 0.0
    %1457 = vmatpush1.msra.mxu0 0.0
    %1458 = vmatprep.subr.mxu0 0.0
    %1459 = vmatpush1.msra.mxu0 0.0
    %1460 = vmatprep.subr.mxu0 0.0
    %1461 = vmatpush1.msra.mxu0 0.0
    %1462 = vmatprep.subr.mxu0 0.0
    %1463 = vmatpush1.msra.mxu0 0.0
    %1464 = vmatprep.subr.mxu0 0.0
    %1465 = vmatpush1.msra.mxu0 0.0
    %1466 = vmatprep.subr.mxu0 0.0
    %1467 = vmatpush1.msra.mxu0 0.0
    %1468 = vmatprep.subr.mxu0 0.0
    %1469 = vmatpush1.msra.mxu0 0.0
    %1470 = vmatprep.subr.mxu0 0.0
    %1471 = vmatpush1.msra.mxu0 0.0
    %1472 = vmatprep.subr.mxu0 0.0
    %1473 = vmatpush1.msra.mxu0 0.0
    %1474 = vmatprep.subr.mxu0 0.0
    %1475 = vmatpush1.msra.mxu0 0.0
    %1476 = vmatprep.subr.mxu0 0.0
    %1477 = vmatpush1.msra.mxu0 0.0
    %1478 = vmatprep.subr.mxu0 0.0
    %1479 = vmatpush1.msra.mxu0 0.0
    %1480 = vmatprep.subr.mxu0 0.0
    %1481 = vmatpush1.msra.mxu0 0.0
    %1482 = vmatprep.subr.mxu0 0.0
    %1483 = vmatpush1.msra.mxu0 0.0
    %1484 = vmatprep.subr.mxu0 0.0
    %1485 = vmatpush1.msra.mxu0 0.0
    %1486 = vmatprep.subr.mxu0 0.0
    %1487 = vmatpush1.msra.mxu0 %v1451
    %1488 = vmatprep.subr.mxu0 0.0
    %1489 = vmatpush2.msra.mxu0 0.0
    %1490 = vmatprep.subr.mxu0 0.0
    %1491 = vmatpush2.msra.mxu0 0.0
    %1492 = vmatprep.subr.mxu0 0.0
    %1493 = vmatpush2.msra.mxu0 0.0
    %1494 = vmatprep.subr.mxu0 0.0
    %1495 = vmatpush2.msra.mxu0 0.0
    %1496 = vmatprep.subr.mxu0 0.0
    %1497 = vmatpush2.msra.mxu0 0.0
    %1498 = vmatprep.subr.mxu0 0.0
    %1499 = vmatpush2.msra.mxu0 0.0
    %1500 = vmatprep.subr.mxu0 0.0
    %1501 = vmatpush2.msra.mxu0 0.0
    %1502 = vmatprep.subr.mxu0 0.0
    %1503 = vmatpush2.msra.mxu0 0.0
    %1504 = vmatprep.subr.mxu0 0.0
    %1505 = vmatpush2.msra.mxu0 0.0
    %1506 = vmatprep.subr.mxu0 0.0
    %1507 = vmatpush2.msra.mxu0 0.0
    %1508 = vmatprep.subr.mxu0 0.0
    %1509 = vmatpush2.msra.mxu0 0.0
    %1510 = vmatprep.subr.mxu0 0.0
    %1511 = vmatpush2.msra.mxu0 0.0
    %1512 = vmatprep.subr.mxu0 0.0
    %1513 = vmatpush2.msra.mxu0 0.0
    %1514 = vmatprep.subr.mxu0 0.0
    %1515 = vmatpush2.msra.mxu0 0.0
    %1516 = vmatprep.subr.mxu0 0.0
    %1517 = vmatpush2.msra.mxu0 0.0
    %1518 = vmatprep.subr.mxu0 0.0
    %1519 = vmatpush2.msra.mxu0 0.0
    %1520 = vmatprep.mubr.f32.mxu0 0.0
    %1521 = vmatmul.mubr.f32.gmra.mxu0 %v1454
    %v1522 = vpop.f32.mrf.mxu0
    %v1523 = vadd.f32 0.0, %v1522
    %v1524 = vpop.f32.mrf.mxu0
    %1525 = vdwg.mxu0
    %1528 = vrot.lane.b32.xlu0 %v783, 8
    %v1529 = vpop.permute.xlu0 %1528
    %1530 = vrot.lane.b32.xlu0 %v859, 8
    %v1531 = vpop.permute.xlu0 %1530
    %1536 = vrot.lane.b32.xlu0 %v1115, 16
    %v1537 = vpop.permute.xlu0 %1536
    %1538 = vrot.lane.b32.xlu0 %v1191, 16
    %v1539 = vpop.permute.xlu0 %1538
    %1544 = vrot.lane.b32.xlu0 %v1447, 24
    %v1545 = vpop.permute.xlu0 %1544
    %1546 = vrot.lane.b32.xlu0 %v1523, 24
    %v1547 = vpop.permute.xlu0 %1546
    %v1550 = vsel %vm202, %v451, %v1529
    %v1551 = vsel %vm202, %v527, %v1531
    %vm1552 = vcmask 130048
    %v1553 = vsel %vm1552, %v1550, %v1537
    %v1554 = vsel %vm1552, %v1551, %v1539
    %vm1555 = vcmask 195584
    %v1556 = vsel %vm1555, %v1553, %v1545
    %v1557 = vsel %vm1555, %v1554, %v1547
    %v1558 = vld [vmem:[%s5] sm:$0xff]
    %v1559 = vld [vmem:[%s5 + $0x8] sm:$0xff]
    %v1560 = vld [vmem:[%s5 + $0x10] sm:$0xff]
    %v1561 = vld [vmem:[%s5 + $0x18] sm:$0xff]
    %v1562 = vld [vmem:[%s6] sm:$0x1]
    %v1564 = vlaneseq
    %v1565 = vshrl.u32 %v1564, 7
    %v1566 = vsub.s32 0, %v1565
    %v1567 = vrot.slane %v1562, %v1566
    %v1570 = vsel %vm63, %v1556, 0
    %v1573 = vsel %vm63, %v1557, 0
    %1575 = vmatprep.subr.mxu0 0.0
    %1576 = vmatpush1.msra.mxu0 0.0
    %1577 = vmatprep.subr.mxu0 0.0
    %1578 = vmatpush1.msra.mxu0 0.0
    %1579 = vmatprep.subr.mxu0 0.0
    %1580 = vmatpush1.msra.mxu0 0.0
    %1581 = vmatprep.subr.mxu0 0.0
    %1582 = vmatpush1.msra.mxu0 0.0
    %1583 = vmatprep.subr.mxu0 0.0
    %1584 = vmatpush1.msra.mxu0 0.0
    %1585 = vmatprep.subr.mxu0 0.0
    %1586 = vmatpush1.msra.mxu0 0.0
    %1587 = vmatprep.subr.mxu0 0.0
    %1588 = vmatpush1.msra.mxu0 0.0
    %1589 = vmatprep.subr.mxu0 0.0
    %1590 = vmatpush1.msra.mxu0 0.0
    %1591 = vmatprep.subr.mxu0 0.0
    %1592 = vmatpush1.msra.mxu0 0.0
    %1593 = vmatprep.subr.mxu0 0.0
    %1594 = vmatpush1.msra.mxu0 0.0
    %1595 = vmatprep.subr.mxu0 0.0
    %1596 = vmatpush1.msra.mxu0 0.0
    %1597 = vmatprep.subr.mxu0 0.0
    %1598 = vmatpush1.msra.mxu0 0.0
    %1599 = vmatprep.subr.mxu0 0.0
    %1600 = vmatpush1.msra.mxu0 %v1561
    %1601 = vmatprep.subr.mxu0 0.0
    %1602 = vmatpush1.msra.mxu0 %v1560
    %1603 = vmatprep.subr.mxu0 0.0
    %1604 = vmatpush1.msra.mxu0 %v1559
    %1605 = vmatprep.subr.mxu0 0.0
    %1606 = vmatpush1.msra.mxu0 %v1558
    %1607 = vmatprep.subr.mxu0 0.0
    %1608 = vmatpush2.msra.mxu0 0.0
    %1609 = vmatprep.subr.mxu0 0.0
    %1610 = vmatpush2.msra.mxu0 0.0
    %1611 = vmatprep.subr.mxu0 0.0
    %1612 = vmatpush2.msra.mxu0 0.0
    %1613 = vmatprep.subr.mxu0 0.0
    %1614 = vmatpush2.msra.mxu0 0.0
    %1615 = vmatprep.subr.mxu0 0.0
    %1616 = vmatpush2.msra.mxu0 0.0
    %1617 = vmatprep.subr.mxu0 0.0
    %1618 = vmatpush2.msra.mxu0 0.0
    %1619 = vmatprep.subr.mxu0 0.0
    %1620 = vmatpush2.msra.mxu0 0.0
    %1621 = vmatprep.subr.mxu0 0.0
    %1622 = vmatpush2.msra.mxu0 0.0
    %1623 = vmatprep.subr.mxu0 0.0
    %1624 = vmatpush2.msra.mxu0 0.0
    %1625 = vmatprep.subr.mxu0 0.0
    %1626 = vmatpush2.msra.mxu0 0.0
    %1627 = vmatprep.subr.mxu0 0.0
    %1628 = vmatpush2.msra.mxu0 0.0
    %1629 = vmatprep.subr.mxu0 0.0
    %1630 = vmatpush2.msra.mxu0 0.0
    %1631 = vmatprep.subr.mxu0 0.0
    %1632 = vmatpush2.msra.mxu0 0.0
    %1633 = vmatprep.subr.mxu0 0.0
    %1634 = vmatpush2.msra.mxu0 0.0
    %1635 = vmatprep.subr.mxu0 0.0
    %1636 = vmatpush2.msra.mxu0 0.0
    %1637 = vmatprep.subr.mxu0 0.0
    %1638 = vmatpush2.msra.mxu0 0.0
    %1639 = vmatprep.mubr.f32.mxu0 0.0
    %1640 = vmatmul.mubr.f32.gmra.mxu0 %v1570
    %v1641 = vpop.f32.mrf.mxu0
    %v1642 = vadd.f32 %v1567, %v1641
    %v1643 = vpop.f32.mrf.mxu0
    %1644 = vmatprep.mubr.f32.mxu0 0.0
    %1645 = vmatmul.mubr.f32.gmra.mxu0 %v1573
    %v1646 = vpop.f32.mrf.mxu0
    %v1647 = vadd.f32 %v1567, %v1646
    %v1648 = vpop.f32.mrf.mxu0
    %1649 = vdwg.mxu0
    %v1650 = vadd.f32 %v59, %v1642
    %v1651 = vadd.f32 %v60, %v1647
    %v1652 = vld [vmem:[%s7] sm:$0x1]
    %v1653 = vld [vmem:[%s8] sm:$0x1]
    %v1654 = vsel %vm63, %v1650, 0.0
    %1655 = vadd.xlane.f32.xlu0 %v1654
    %v1656 = vpop.xlane.xlu0 %1655
    %v1657 = vsel %vm63, %v1651, 0.0
    %1658 = vadd.xlane.f32.xlu0 %v1657
    %v1659 = vpop.xlane.xlu0 %1658
    %v1660 = vmul.f32 %v1656, %v70
    %v1661 = vmul.f32 %v1659, %v70
    %v1662 = vsub.f32 %v1650, %v1660
    %v1663 = vsub.f32 %v1651, %v1661
    %v1664 = vmul.f32 %v1662, %v1662
    %v1665 = vmul.f32 %v1663, %v1663
    %v1666 = vsel %vm63, %v1664, 0.0
    %1667 = vadd.xlane.f32.xlu0 %v1666
    %v1668 = vpop.xlane.xlu0 %1667
    %v1669 = vsel %vm63, %v1665, 0.0
    %1670 = vadd.xlane.f32.xlu0 %v1669
    %v1671 = vpop.xlane.xlu0 %1670
    %v1672 = vmul.f32 %v1668, %v70
    %v1673 = vmul.f32 %v1671, %v70
    %v1674 = vadd.f32 %v1672, 1e-05
    %v1675 = vadd.f32 %v1673, 1e-05
    %v1676 = vrsqrt.pop %v1674
    %v1677 = vrsqrt.pop %v1675
    %v1678 = vmul.f32 %v1662, %v1676
    %v1679 = vmul.f32 %v1663, %v1677
    %v1681 = vlaneseq
    %v1682 = vshrl.u32 %v1681, 7
    %v1683 = vsub.s32 0, %v1682
    %v1684 = vrot.slane %v1652, %v1683
    %v1686 = vmul.f32 %v1678, %v1684
    %v1687 = vmul.f32 %v1679, %v1684
    %v1689 = vlaneseq
    %v1690 = vshrl.u32 %v1689, 7
    %v1691 = vsub.s32 0, %v1690
    %v1692 = vrot.slane %v1653, %v1691
    %v1694 = vadd.f32 %v1686, %v1692
    %v1695 = vadd.f32 %v1687, %v1692
    %v1696 = vld [vmem:[%s9] sm:$0xff]
    %v1697 = vld [vmem:[%s9 + $0x8] sm:$0xff]
    %v1698 = vld [vmem:[%s9 + $0x10] sm:$0xff]
    %v1699 = vld [vmem:[%s9 + $0x18] sm:$0xff]
    %v1700 = vld [vmem:[%s10] sm:$0x1]
    %v1702 = vlaneseq
    %v1703 = vshrl.u32 %v1702, 7
    %v1704 = vsub.s32 0, %v1703
    %v1705 = vrot.slane %v1700, %v1704
    %v1708 = vsel %vm63, %v1694, 0
    %v1711 = vsel %vm63, %v1695, 0
    %1713 = vmatprep.subr.mxu0 0.0
    %1714 = vmatpush1.msra.mxu0 0.0
    %1715 = vmatprep.subr.mxu0 0.0
    %1716 = vmatpush1.msra.mxu0 0.0
    %1717 = vmatprep.subr.mxu0 0.0
    %1718 = vmatpush1.msra.mxu0 0.0
    %1719 = vmatprep.subr.mxu0 0.0
    %1720 = vmatpush1.msra.mxu0 0.0
    %1721 = vmatprep.subr.mxu0 0.0
    %1722 = vmatpush1.msra.mxu0 0.0
    %1723 = vmatprep.subr.mxu0 0.0
    %1724 = vmatpush1.msra.mxu0 0.0
    %1725 = vmatprep.subr.mxu0 0.0
    %1726 = vmatpush1.msra.mxu0 0.0
    %1727 = vmatprep.subr.mxu0 0.0
    %1728 = vmatpush1.msra.mxu0 0.0
    %1729 = vmatprep.subr.mxu0 0.0
    %1730 = vmatpush1.msra.mxu0 0.0
    %1731 = vmatprep.subr.mxu0 0.0
    %1732 = vmatpush1.msra.mxu0 0.0
    %1733 = vmatprep.subr.mxu0 0.0
    %1734 = vmatpush1.msra.mxu0 0.0
    %1735 = vmatprep.subr.mxu0 0.0
    %1736 = vmatpush1.msra.mxu0 0.0
    %1737 = vmatprep.subr.mxu0 0.0
    %1738 = vmatpush1.msra.mxu0 %v1699
    %1739 = vmatprep.subr.mxu0 0.0
    %1740 = vmatpush1.msra.mxu0 %v1698
    %1741 = vmatprep.subr.mxu0 0.0
    %1742 = vmatpush1.msra.mxu0 %v1697
    %1743 = vmatprep.subr.mxu0 0.0
    %1744 = vmatpush1.msra.mxu0 %v1696
    %1745 = vmatprep.subr.mxu0 0.0
    %1746 = vmatpush2.msra.mxu0 0.0
    %1747 = vmatprep.subr.mxu0 0.0
    %1748 = vmatpush2.msra.mxu0 0.0
    %1749 = vmatprep.subr.mxu0 0.0
    %1750 = vmatpush2.msra.mxu0 0.0
    %1751 = vmatprep.subr.mxu0 0.0
    %1752 = vmatpush2.msra.mxu0 0.0
    %1753 = vmatprep.subr.mxu0 0.0
    %1754 = vmatpush2.msra.mxu0 0.0
    %1755 = vmatprep.subr.mxu0 0.0
    %1756 = vmatpush2.msra.mxu0 0.0
    %1757 = vmatprep.subr.mxu0 0.0
    %1758 = vmatpush2.msra.mxu0 0.0
    %1759 = vmatprep.subr.mxu0 0.0
    %1760 = vmatpush2.msra.mxu0 0.0
    %1761 = vmatprep.subr.mxu0 0.0
    %1762 = vmatpush2.msra.mxu0 0.0
    %1763 = vmatprep.subr.mxu0 0.0
    %1764 = vmatpush2.msra.mxu0 0.0
    %1765 = vmatprep.subr.mxu0 0.0
    %1766 = vmatpush2.msra.mxu0 0.0
    %1767 = vmatprep.subr.mxu0 0.0
    %1768 = vmatpush2.msra.mxu0 0.0
    %1769 = vmatprep.subr.mxu0 0.0
    %1770 = vmatpush2.msra.mxu0 0.0
    %1771 = vmatprep.subr.mxu0 0.0
    %1772 = vmatpush2.msra.mxu0 0.0
    %1773 = vmatprep.subr.mxu0 0.0
    %1774 = vmatpush2.msra.mxu0 0.0
    %1775 = vmatprep.subr.mxu0 0.0
    %1776 = vmatpush2.msra.mxu0 0.0
    %1777 = vmatprep.mubr.f32.mxu0 0.0
    %1778 = vmatmul.mubr.f32.gmra.mxu0 %v1708
    %v1779 = vpop.f32.mrf.mxu0
    %v1780 = vadd.f32 %v1705, %v1779
    %v1781 = vpop.f32.mrf.mxu0
    %1782 = vmatprep.mubr.f32.mxu0 0.0
    %1783 = vmatmul.mubr.f32.gmra.mxu0 %v1711
    %v1784 = vpop.f32.mrf.mxu0
    %v1785 = vadd.f32 %v1705, %v1784
    %v1786 = vpop.f32.mrf.mxu0
    %1787 = vdwg.mxu0
    %v1788 = vmul.f32 %v1780, 0.5
    %v1789 = vmul.f32 %v1785, 0.5
    %v1790 = vmul.f32 %v1780, 0.70710677
    %v1791 = vmul.f32 %v1785, 0.70710677
    %v1792 = verf.f32.pop %v1790
    %v1793 = verf.f32.pop %v1791
    %v1794 = vadd.f32 %v1792, 1.0
    %v1795 = vadd.f32 %v1793, 1.0
    %v1796 = vmul.f32 %v1788, %v1794
    %v1797 = vmul.f32 %v1789, %v1795
    %v1798 = vld [vmem:[%s11] sm:$0xff]
    %v1799 = vld [vmem:[%s11 + $0x8] sm:$0xff]
    %v1800 = vld [vmem:[%s11 + $0x10] sm:$0xff]
    %v1801 = vld [vmem:[%s11 + $0x18] sm:$0xff]
    %v1802 = vld [vmem:[%s11 + $0x20] sm:$0xff]
    %v1803 = vld [vmem:[%s11 + $0x28] sm:$0xff]
    %v1804 = vld [vmem:[%s11 + $0x30] sm:$0xff]
    %v1805 = vld [vmem:[%s11 + $0x38] sm:$0xff]
    %v1806 = vld [vmem:[%s12] sm:$0x1]
    %v1808 = vlaneseq
    %v1809 = vshrl.u32 %v1808, 7
    %v1810 = vsub.s32 0, %v1809
    %v1811 = vrot.slane %v1806, %v1810
    %vm1813 = vcmask 523264
    %v1815 = vsel %vm1813, %v1796, 0
    %v1818 = vsel %vm1813, %v1797, 0
    %1820 = vmatprep.subr.mxu0 0.0
    %1821 = vmatpush1.msra.mxu0 0.0
    %1822 = vmatprep.subr.mxu0 0.0
    %1823 = vmatpush1.msra.mxu0 0.0
    %1824 = vmatprep.subr.mxu0 0.0
    %1825 = vmatpush1.msra.mxu0 0.0
    %1826 = vmatprep.subr.mxu0 0.0
    %1827 = vmatpush1.msra.mxu0 0.0
    %1828 = vmatprep.subr.mxu0 0.0
    %1829 = vmatpush1.msra.mxu0 0.0
    %1830 = vmatprep.subr.mxu0 0.0
    %1831 = vmatpush1.msra.mxu0 0.0
    %1832 = vmatprep.subr.mxu0 0.0
    %1833 = vmatpush1.msra.mxu0 0.0
    %1834 = vmatprep.subr.mxu0 0.0
    %1835 = vmatpush1.msra.mxu0 0.0
    %1836 = vmatprep.subr.mxu0 0.0
    %1837 = vmatpush1.msra.mxu0 %v1805
    %1838 = vmatprep.subr.mxu0 0.0
    %1839 = vmatpush1.msra.mxu0 %v1804
    %1840 = vmatprep.subr.mxu0 0.0
    %1841 = vmatpush1.msra.mxu0 %v1803
    %1842 = vmatprep.subr.mxu0 0.0
    %1843 = vmatpush1.msra.mxu0 %v1802
    %1844 = vmatprep.subr.mxu0 0.0
    %1845 = vmatpush1.msra.mxu0 %v1801
    %1846 = vmatprep.subr.mxu0 0.0
    %1847 = vmatpush1.msra.mxu0 %v1800
    %1848 = vmatprep.subr.mxu0 0.0
    %1849 = vmatpush1.msra.mxu0 %v1799
    %1850 = vmatprep.subr.mxu0 0.0
    %1851 = vmatpush1.msra.mxu0 %v1798
    %1852 = vmatprep.subr.mxu0 0.0
    %1853 = vmatpush2.msra.mxu0 0.0
    %1854 = vmatprep.subr.mxu0 0.0
    %1855 = vmatpush2.msra.mxu0 0.0
    %1856 = vmatprep.subr.mxu0 0.0
    %1857 = vmatpush2.msra.mxu0 0.0
    %1858 = vmatprep.subr.mxu0 0.0
    %1859 = vmatpush2.msra.mxu0 0.0
    %1860 = vmatprep.subr.mxu0 0.0
    %1861 = vmatpush2.msra.mxu0 0.0
    %1862 = vmatprep.subr.mxu0 0.0
    %1863 = vmatpush2.msra.mxu0 0.0
    %1864 = vmatprep.subr.mxu0 0.0
    %1865 = vmatpush2.msra.mxu0 0.0
    %1866 = vmatprep.subr.mxu0 0.0
    %1867 = vmatpush2.msra.mxu0 0.0
    %1868 = vmatprep.subr.mxu0 0.0
    %1869 = vmatpush2.msra.mxu0 0.0
    %1870 = vmatprep.subr.mxu0 0.0
    %1871 = vmatpush2.msra.mxu0 0.0
    %1872 = vmatprep.subr.mxu0 0.0
    %1873 = vmatpush2.msra.mxu0 0.0
    %1874 = vmatprep.subr.mxu0 0.0
    %1875 = vmatpush2.msra.mxu0 0.0
    %1876 = vmatprep.subr.mxu0 0.0
    %1877 = vmatpush2.msra.mxu0 0.0
    %1878 = vmatprep.subr.mxu0 0.0
    %1879 = vmatpush2.msra.mxu0 0.0
    %1880 = vmatprep.subr.mxu0 0.0
    %1881 = vmatpush2.msra.mxu0 0.0
    %1882 = vmatprep.subr.mxu0 0.0
    %1883 = vmatpush2.msra.mxu0 0.0
    %1884 = vmatprep.mubr.f32.mxu0 0.0
    %1885 = vmatmul.mubr.f32.gmra.mxu0 %v1815
    %v1886 = vpop.f32.mrf.mxu0
    %v1887 = vadd.f32 %v1811, %v1886
    %v1888 = vpop.f32.mrf.mxu0
    %1889 = vmatprep.mubr.f32.mxu0 0.0
    %1890 = vmatmul.mubr.f32.gmra.mxu0 %v1818
    %v1891 = vpop.f32.mrf.mxu0
    %v1892 = vadd.f32 %v1811, %v1891
    %v1893 = vpop.f32.mrf.mxu0
    %1894 = vdwg.mxu0
    %v1895 = vadd.f32 %v1650, %v1887
    %v1896 = vadd.f32 %v1651, %v1892
    %1897 = vst.msk [vmem:[#allocation5] sm:$0xff] %vm63, %v1895
    %1898 = vst.msk [vmem:[#allocation5 + $0x8] sm:$0xff] %vm63, %v1896
    // Predicated region
    $region58: #{tpu_custom_call.1} parent=1 // pred_check
      _
    $region59: #{tpu_custom_call.1} parent=1 // pred_check_branch
      %1900 = sbr.rel (0) target = $region61
    $region60: #{tpu_custom_call.1} parent=1 // pred_region
      %s1902 = ssub.s32 256, 256
      %1903 = vsyncadd [#allocation4], %s1902
      %s1904 = sshll.u32 [#allocation5], 4
      %s1905 = int_to_ptr.vmem [resolvable:$true] %s1904
      %1910 = dma.vmem_to_hbm [thread:$0]  %s1905, 256, %s13, [#allocation4], 128, 128, 8
    $region61: #{tpu_custom_call.1} parent=1 // pred_fallthru
      _
    // Predicated region
    $region62: #{tpu_custom_call.1} parent=1 // pred_check
      _
    $region63: #{tpu_custom_call.1} parent=1 // pred_check_branch
      %1912 = sbr.rel (0) target = $region65
    $region64: #{tpu_custom_call.1} parent=1 // pred_region
      %1913 = dma.done [#allocation4], 256
    $region65: #{tpu_custom_call.1} parent=1 // pred_fallthru
      _
    %1914 = vsyncpa [#allocation3], 1
    %1915 = vsyncpa [#allocation4], 1

</llo_original>
